<compile_context>
chip_gen: v5e
topology: v5e:2x2
jax: 0.10.0
libtpu: 0.0.40
codegen_flags: <defaults>
</compile_context>

<pallas_src>
import functools
import numpy as np
import jax
import jax.numpy as jnp
from jax.experimental import pallas as pl
from jax.experimental.pallas import tpu as pltpu


# ---------------------------------------------------------------------------
# Fused Pallas kernel: patch embed -> token assembly -> 6 encoder layers ->
# final LayerNorm -> classification head.
# ---------------------------------------------------------------------------

def timesformer_fused_kernel(
        patches_ref, pw_ref, pb_ref, add_ref, seg_sum_ref, seg_exp_ref,
        wqkv_ref, bqkv_ref, wo_ref, bo_ref, ln1g_ref, ln1b_ref,
        w1_ref, b1_ref, w2_ref, b2_ref, ln2g_ref, ln2b_ref,
        ng_ref, nb_ref, hw_ref, hb_ref, o_ref, *, num_batches, num_layers):
    f32, bf16 = jnp.float32, jnp.bfloat16
    B = num_batches
    D = pw_ref.shape[1]
    H = seg_sum_ref.shape[1]                  # number of heads
    Hd = D // H
    S_pad = add_ref.shape[0]                  # padded per-batch block rows
    TP = patches_ref.shape[0] // B            # patch tokens per batch
    N = B * S_pad                             # rows in the token slab
    scale = 1.0 / float(np.sqrt(Hd))
    eps = 1e-5

    def dot(a, b):                            # bf16 operands, f32 accumulate
        return jnp.dot(a.astype(bf16), b, preferred_element_type=f32)

    def layer_norm(y, g, b):
        mu = jnp.mean(y, axis=-1, keepdims=True)
        var = jnp.mean((y - mu) ** 2, axis=-1, keepdims=True)
        return (y - mu) * jax.lax.rsqrt(var + eps) * g + b

    # --- Patch embedding: Conv2d(kernel=stride=patch) as one MXU matmul. ---
    emb = dot(patches_ref[...], pw_ref[...]) + pb_ref[...]      # (B*TP, D)

    # --- Token assembly: per-batch block = [patch tokens | cls | padding];
    #     the positional embedding / cls token are folded into the (S_pad, D)
    #     additive term.  Aligned sublane concat -> no scatter matmul. ------
    add = add_ref[...]
    add_patch = add[0:TP, :]                  # pos-embed rows for patches
    add_tail = add[TP:, :]                    # cls row (+ zero padding rows)
    blocks = []
    for b in range(B):
        blocks.append(emb[b * TP:(b + 1) * TP, :] + add_patch)
        blocks.append(add_tail)
    x = jnp.concatenate(blocks, axis=0)       # (N, D) f32

    # Weights are read once (already bf16) and stay resident for all layers.
    seg_sum = seg_sum_ref[...]                # (D, H): per-head lane sums
    seg_exp = seg_exp_ref[...]                # (H, D): per-head lane expand
    wqkv = wqkv_ref[...]; bqkv = bqkv_ref[...]
    wo = wo_ref[...]; bo = bo_ref[...]
    ln1g = ln1g_ref[...]; ln1b = ln1b_ref[...]
    w1 = w1_ref[...]; b1 = b1_ref[...]
    w2 = w2_ref[...]; b2 = b2_ref[...]
    ln2g = ln2g_ref[...]; ln2b = ln2b_ref[...]

    def layer(_, x):
        # Fused Q/K/V projection: one (N, D) @ (D, 3D) MXU dot.
        qkv = dot(x, wqkv) + bqkv                               # (N, 3D) f32
        q = qkv[:, 0:D]
        k = qkv[:, D:2 * D]
        v = qkv[:, 2 * D:3 * D]

        # batch_first=False quirk: token (b, s) attends over tokens (c, s)
        # for every batch c.  Partner batches are brought in with sublane
        # rolls by multiples of S_pad (XLU; zero FLOPs, no quadratic
        # constant).  j = 0 is "self"; softmax over the full partner set is
        # order-invariant, so the roll direction does not matter.
        ks = [k] + [pltpu.roll(k, shift=j * S_pad, axis=0) for j in range(1, B)]
        vs = [v] + [pltpu.roll(v, shift=j * S_pad, axis=0) for j in range(1, B)]
        # TODO(synk): for large B switch to an online-softmax fori_loop over
        #   partners (carry m/den/ctx) so only one rolled K/V slab is live.

        # Per-head scores for every partner in ONE (B*N, D) @ (D, H) dot.
        qk_all = jnp.concatenate([q * kj for kj in ks], axis=0)
        s_all = dot(qk_all, seg_sum) * scale                    # (B*N, H)
        scores = [s_all[j * N:(j + 1) * N, :] for j in range(B)]
        m = scores[0]
        for sj in scores[1:]:
            m = jnp.maximum(m, sj)
        e = [jnp.exp(sj - m) for sj in scores]
        den = e[0]
        for ej in e[1:]:
            den = den + ej
        inv = pl.reciprocal(den, approx=True)                   # EUP slot

        # Expand per-head softmax weights to D lanes in ONE dot, combine V.
        p_all = jnp.concatenate([ej * inv for ej in e], axis=0)
        w_all = dot(p_all, seg_exp)                             # (B*N, D)
        ctx = w_all[0:N, :] * vs[0]
        for j in range(1, B):
            ctx = ctx + w_all[j * N:(j + 1) * N, :] * vs[j]

        # Output projection + post-norm residual block (ReLU FF, dropout=id).
        y = layer_norm(x + dot(ctx, wo) + bo, ln1g, ln1b)
        h = jnp.maximum(dot(y, w1) + b1, 0.0)
        return layer_norm(y + dot(h, w2) + b2, ln2g, ln2b)

    # The PyTorch ModuleList holds the SAME encoder-layer object 6 times, so
    # all blocks share one weight set -> plain fori_loop, weights resident.
    x = jax.lax.fori_loop(0, num_layers, layer, x)

    # --- Final LayerNorm + head on the cls rows (internal row TP of every
    #     per-batch block) -- plain row gather, no selection matmul. --------
    cls = jnp.concatenate(
        [x[b * S_pad + TP:b * S_pad + TP + 1, :] for b in range(B)], axis=0)
    xn = layer_norm(cls, ng_ref[...], nb_ref[...])
    o_ref[...] = dot(xn, hw_ref[...]) + hb_ref[...]             # (B, nc)


# ---------------------------------------------------------------------------
# Glue (patch extraction, pos-embed interpolation, constant prep) in JAX.
# ---------------------------------------------------------------------------

def _extract_patches(x, ps):
    # (B, T, C, H, W) -> (B*T*P, C*ps*ps) in row-major (h, w) patch order,
    # matching Conv2d(stride=patch).flatten(2).transpose(1, 2).
    B, T, C, H, W = x.shape
    nh, nw = H // ps, W // ps
    xf = x.reshape(B * T, C, nh, ps, nw, ps)
    xf = jnp.transpose(xf, (0, 2, 4, 1, 3, 5))
    return xf.reshape(B * T * nh * nw, C * ps * ps), nh * nw


def interpolate_pos_embed(pos, out_len):
    # pos: (P0, D); matches F.interpolate(mode='linear', align_corners=False).
    p0, _ = pos.shape
    if p0 == out_len:
        return pos
    scale = p0 / out_len
    coords = (jnp.arange(out_len, dtype=jnp.float32) + 0.5) * scale - 0.5
    coords = jnp.clip(coords, 0.0, float(p0 - 1))
    lo = jnp.floor(coords).astype(jnp.int32)
    hi = jnp.minimum(lo + 1, p0 - 1)
    frac = (coords - lo.astype(jnp.float32))[:, None]
    return (1.0 - frac) * pos[lo] + frac * pos[hi]


def timesformer_forward(x, params, cfg):
    B, T, C, H, W = x.shape
    ps, D, nc = cfg["patch_size"], cfg["d_model"], cfg["num_classes"]
    nheads, dff, L = cfg["nhead"], cfg["dff"], cfg["num_layers"]
    Hd = D // nheads
    bf16 = jnp.bfloat16

    patches, num_patches = _extract_patches(x, ps)           # (B*TP, K)
    K = patches.shape[1]
    TP = T * num_patches
    S = TP + 1
    S_pad = ((S + 7) // 8) * 8     # pad per-batch block to a sublane multiple
    N = B * S_pad

    # Positional embedding (linear interp when sequence length differs);
    # additive term laid out to match the kernel's per-batch block layout
    # [patch tokens | cls | padding]:  pos[1:], pos[0]+cls_token, zeros.
    pos = interpolate_pos_embed(params["pos_embed"][0], S)    # (S, D)
    add = jnp.concatenate(
        [pos[1:], pos[0:1] + params["cls_token"][0, 0][None, :],
         jnp.zeros((S_pad - S, D), jnp.float32)], axis=0)     # (S_pad, D)

    # Tiny per-head lane-sum / lane-expand constants (0/1: exact in bf16).
    seg_sum = np.zeros((D, nheads), np.float32)
    for d in range(D):
        seg_sum[d, d // Hd] = 1.0
    seg_exp = np.ascontiguousarray(seg_sum.T)

    # Fused QKV weight; all matmul weights shipped as bf16 (half the DMA).
    wqkv = jnp.concatenate([params["wq"], params["wk"], params["wv"]], axis=1)
    bqkv = jnp.concatenate([params["bq"], params["bk"], params["bv"]], axis=1)

    args = (patches, params["patch_w"].astype(bf16), params["patch_b"],
            add, jnp.asarray(seg_sum, bf16), jnp.asarray(seg_exp, bf16),
            wqkv.astype(bf16), bqkv,
            params["wo"].astype(bf16), params["bo"],
            params["ln1_g"], params["ln1_b"],
            params["w1"].astype(bf16), params["b1"],
            params["w2"].astype(bf16), params["b2"],
            params["ln2_g"], params["ln2_b"],
            params["norm_g"], params["norm_b"],
            params["head_w"].astype(bf16), params["head_b"])

    # Advisory cost estimate so XLA schedules surrounding ops sensibly.
    flops_layer = (2 * N * D * 3 * D           # fused QKV projection
                   + 4 * B * N * D * nheads    # scores + weight expansion
                   + 2 * N * D * D             # output projection
                   + 4 * N * D * dff)          # feed-forward
    flops = 2 * B * TP * K * D + L * flops_layer + 2 * B * D * nc
    transc = L * ((B + 1) * N * nheads + 2 * N) + 2 * B
    bytes_accessed = (sum(int(np.prod(a.shape)) * a.dtype.itemsize for a in args)
                      + B * nc * 4)

    vmem = pl.BlockSpec(memory_space=pltpu.MemorySpace.VMEM)
    logits = pl.pallas_call(
        functools.partial(timesformer_fused_kernel,
                          num_batches=B, num_layers=L),
        out_shape=jax.ShapeDtypeStruct((B, nc), jnp.float32),
        in_specs=[vmem] * len(args),
        out_specs=vmem,
        compiler_params=pltpu.CompilerParams(
            vmem_limit_bytes=32 * 1024 * 1024),
        cost_estimate=pl.CostEstimate(flops=int(flops),
                                      transcendentals=int(transc),
                                      bytes_accessed=int(bytes_accessed)),
    )(*args)

    return jnp.repeat(logits[:, None, :], T, axis=1)      # (B, T, num_classes)


def init_params(key, cfg, in_channels=3):
    D, Hh, dff, nc = cfg["d_model"], cfg["nhead"], cfg["dff"], cfg["num_classes"]
    ps, img = cfg["patch_size"], cfg["img_size"]
    K = in_channels * ps * ps
    P0 = (img // ps) ** 2 + 1
    keys = jax.random.split(key, 16)
    n = lambda k, shape: 0.02 * jax.random.normal(k, shape, jnp.float32)
    f32 = jnp.float32
    return {
        "cls_token": jnp.zeros((1, 1, D), f32),    # zeros, matching PyTorch
        "pos_embed": n(keys[1], (1, P0, D)),       # random to exercise interp
        "patch_w": n(keys[2], (K, D)),             # Conv2d weight flattened
        "patch_b": n(keys[3], (1, D)),
        "wq": n(keys[4], (D, D)), "bq": n(keys[7], (1, D)),
        "wk": n(keys[5], (D, D)), "bk": n(keys[8], (1, D)),
        "wv": n(keys[6], (D, D)), "bv": n(keys[9], (1, D)),
        "wo": n(keys[10], (D, D)), "bo": n(keys[11], (1, D)),
        "ln1_g": jnp.ones((1, D), f32), "ln1_b": jnp.zeros((1, D), f32),
        "w1": n(keys[12], (D, dff)), "b1": jnp.zeros((1, dff), f32),
        "w2": n(keys[13], (dff, D)), "b2": jnp.zeros((1, D), f32),
        "ln2_g": jnp.ones((1, D), f32), "ln2_b": jnp.zeros((1, D), f32),
        "norm_g": jnp.ones((1, D), f32), "norm_b": jnp.zeros((1, D), f32),
        "head_w": n(keys[14], (D, nc)), "head_b": n(keys[15], (1, nc)),
    }


# ---------------------------------------------------------------------------
# Pure-JAX reference (same semantics, incl. batch-axis attention mixing).
# ---------------------------------------------------------------------------

def ref_forward(x, p, cfg):
    hp = jax.lax.Precision.HIGHEST
    B, T, C, H, W = x.shape
    ps, D = cfg["patch_size"], cfg["d_model"]
    Hh = cfg["nhead"]
    Hd = D // Hh
    patches, num_patches = _extract_patches(x, ps)
    emb = jnp.matmul(patches, p["patch_w"], precision=hp) + p["patch_b"]
    tokens = emb.reshape(B, T * num_patches, D)
    xt = jnp.concatenate([jnp.broadcast_to(p["cls_token"], (B, 1, D)), tokens], 1)
    S = xt.shape[1]
    xt = xt + interpolate_pos_embed(p["pos_embed"][0], S)[None]
    scale = 1.0 / np.sqrt(Hd)

    def ln(y, g, b):
        mu = y.mean(-1, keepdims=True)
        var = ((y - mu) ** 2).mean(-1, keepdims=True)
        return (y - mu) / jnp.sqrt(var + 1e-5) * g + b

    for _ in range(cfg["num_layers"]):
        q = (jnp.matmul(xt, p["wq"], precision=hp) + p["bq"]).reshape(B, S, Hh, Hd)
        k = (jnp.matmul(xt, p["wk"], precision=hp) + p["bk"]).reshape(B, S, Hh, Hd)
        v = (jnp.matmul(xt, p["wv"], precision=hp) + p["bv"]).reshape(B, S, Hh, Hd)
        sc = jnp.einsum("bshe,cshe->shbc", q, k, precision=hp) * scale
        a = jax.nn.softmax(sc, axis=-1)
        ctx = jnp.einsum("shbc,cshe->bshe", a, v, precision=hp).reshape(B, S, D)
        ao = jnp.matmul(ctx, p["wo"], precision=hp) + p["bo"]
        y = ln(xt + ao, p["ln1_g"], p["ln1_b"])
        ff = jnp.matmul(
            jnp.maximum(jnp.matmul(y, p["w1"], precision=hp) + p["b1"], 0.0),
            p["w2"], precision=hp) + p["b2"]
        xt = ln(y + ff, p["ln2_g"], p["ln2_b"])

    xt = ln(xt, p["norm_g"], p["norm_b"])
    logits = jnp.matmul(xt[:, 0], p["head_w"], precision=hp) + p["head_b"]
    return jnp.repeat(logits[:, None, :], T, axis=1)


# ---------------------------------------------------------------------------

if __name__ == "__main__":
    cfg = dict(img_size=16, patch_size=8, d_model=128, nhead=4, dff=256,
               num_layers=6, num_classes=2)
    B, T, C, Himg, Wimg = 2, 2, 3, 16, 16

    key = jax.random.PRNGKey(0)
    params = init_params(key, cfg, in_channels=C)
    x = jax.random.normal(jax.random.fold_in(key, 99),
                          (B, T, C, Himg, Wimg), jnp.float32)

    fwd = jax.jit(functools.partial(timesformer_forward, cfg=cfg))
    out = jax.block_until_ready(fwd(x, params))

    assert out.shape == (B, T, cfg["num_classes"]), out.shape
    ref = np.asarray(ref_forward(x, params, cfg))
    # bf16 MXU operands + approx reciprocal vs. an f32 HIGHEST reference.
    np.testing.assert_allclose(np.asarray(out), ref, rtol=3e-2, atol=3e-2)
    print("KERNEL_OK")
</pallas_src>

<mosaic_0001>
module attributes {stable_mosaic.version = 11 : i64} {
  func.func @timesformer_fused_kernel(%arg0: memref<16x192xf32, #tpu.memory_space<vmem>>, %arg1: memref<192x128xbf16, #tpu.memory_space<vmem>>, %arg2: memref<1x128xf32, #tpu.memory_space<vmem>>, %arg3: memref<16x128xf32, #tpu.memory_space<vmem>>, %arg4: memref<128x4xbf16, #tpu.memory_space<vmem>>, %arg5: memref<4x128xbf16, #tpu.memory_space<vmem>>, %arg6: memref<128x384xbf16, #tpu.memory_space<vmem>>, %arg7: memref<1x384xf32, #tpu.memory_space<vmem>>, %arg8: memref<128x128xbf16, #tpu.memory_space<vmem>>, %arg9: memref<1x128xf32, #tpu.memory_space<vmem>>, %arg10: memref<1x128xf32, #tpu.memory_space<vmem>>, %arg11: memref<1x128xf32, #tpu.memory_space<vmem>>, %arg12: memref<128x256xbf16, #tpu.memory_space<vmem>>, %arg13: memref<1x256xf32, #tpu.memory_space<vmem>>, %arg14: memref<256x128xbf16, #tpu.memory_space<vmem>>, %arg15: memref<1x128xf32, #tpu.memory_space<vmem>>, %arg16: memref<1x128xf32, #tpu.memory_space<vmem>>, %arg17: memref<1x128xf32, #tpu.memory_space<vmem>>, %arg18: memref<1x128xf32, #tpu.memory_space<vmem>>, %arg19: memref<1x128xf32, #tpu.memory_space<vmem>>, %arg20: memref<128x2xbf16, #tpu.memory_space<vmem>>, %arg21: memref<1x2xf32, #tpu.memory_space<vmem>>, %arg22: memref<2x2xf32, #tpu.memory_space<vmem>>) attributes {dimension_semantics = [], scalar_prefetch = 0 : i64, scratch_operands = 0 : i64, tpu.core_type = #tpu.core_type<tc>} {
    %c0 = arith.constant 0 : index
    %c0_0 = arith.constant 0 : index
    %0 = vector.load %arg0[%c0, %c0_0] : memref<16x192xf32, #tpu.memory_space<vmem>>, vector<16x192xf32>
    %c0_1 = arith.constant 0 : index
    %c0_2 = arith.constant 0 : index
    %1 = vector.load %arg1[%c0_1, %c0_2] : memref<192x128xbf16, #tpu.memory_space<vmem>>, vector<192x128xbf16>
    %2 = arith.truncf %0 : vector<16x192xf32> to vector<16x192xbf16>
    %cst = arith.constant dense<0.000000e+00> : vector<16x128xf32>
    %3 = tpu.matmul %2, %1, %cst {dimension_numbers = #tpu.dot_dimension_numbers<[1], [0], [0], [1], [0, 0, 1, 1], [], []>} : vector<16x192xbf16>, vector<192x128xbf16>, vector<16x128xf32> -> vector<16x128xf32>
    %c0_3 = arith.constant 0 : index
    %c0_4 = arith.constant 0 : index
    %4 = vector.load %arg2[%c0_3, %c0_4] : memref<1x128xf32, #tpu.memory_space<vmem>>, vector<1x128xf32>
    %5 = vector.broadcast %4 : vector<1x128xf32> to vector<16x128xf32>
    %6 = arith.addf %3, %5 : vector<16x128xf32>
    %c0_5 = arith.constant 0 : index
    %c0_6 = arith.constant 0 : index
    %7 = vector.load %arg3[%c0_5, %c0_6] : memref<16x128xf32, #tpu.memory_space<vmem>>, vector<16x128xf32>
    %8 = vector.extract_strided_slice %7 {offsets = [0, 0], sizes = [8, 128], strides = [1, 1]} : vector<16x128xf32> to vector<8x128xf32>
    %9 = vector.extract_strided_slice %7 {offsets = [8, 0], sizes = [8, 128], strides = [1, 1]} : vector<16x128xf32> to vector<8x128xf32>
    %10 = vector.extract_strided_slice %6 {offsets = [0, 0], sizes = [8, 128], strides = [1, 1]} : vector<16x128xf32> to vector<8x128xf32>
    %11 = arith.addf %10, %8 : vector<8x128xf32>
    %12 = vector.extract_strided_slice %6 {offsets = [8, 0], sizes = [8, 128], strides = [1, 1]} : vector<16x128xf32> to vector<8x128xf32>
    %13 = arith.addf %12, %8 : vector<8x128xf32>
    %14 = tpu.concatenate %11, %9, %13, %9 in 0 : vector<8x128xf32>, vector<8x128xf32>, vector<8x128xf32>, vector<8x128xf32> -> vector<32x128xf32>
    %c0_7 = arith.constant 0 : index
    %c0_8 = arith.constant 0 : index
    %15 = vector.load %arg4[%c0_7, %c0_8] : memref<128x4xbf16, #tpu.memory_space<vmem>>, vector<128x4xbf16>
    %c0_9 = arith.constant 0 : index
    %c0_10 = arith.constant 0 : index
    %16 = vector.load %arg5[%c0_9, %c0_10] : memref<4x128xbf16, #tpu.memory_space<vmem>>, vector<4x128xbf16>
    %c0_11 = arith.constant 0 : index
    %c0_12 = arith.constant 0 : index
    %17 = vector.load %arg6[%c0_11, %c0_12] : memref<128x384xbf16, #tpu.memory_space<vmem>>, vector<128x384xbf16>
    %c0_13 = arith.constant 0 : index
    %c0_14 = arith.constant 0 : index
    %18 = vector.load %arg7[%c0_13, %c0_14] : memref<1x384xf32, #tpu.memory_space<vmem>>, vector<1x384xf32>
    %c0_15 = arith.constant 0 : index
    %c0_16 = arith.constant 0 : index
    %19 = vector.load %arg8[%c0_15, %c0_16] : memref<128x128xbf16, #tpu.memory_space<vmem>>, vector<128x128xbf16>
    %c0_17 = arith.constant 0 : index
    %c0_18 = arith.constant 0 : index
    %20 = vector.load %arg9[%c0_17, %c0_18] : memref<1x128xf32, #tpu.memory_space<vmem>>, vector<1x128xf32>
    %c0_19 = arith.constant 0 : index
    %c0_20 = arith.constant 0 : index
    %21 = vector.load %arg10[%c0_19, %c0_20] : memref<1x128xf32, #tpu.memory_space<vmem>>, vector<1x128xf32>
    %c0_21 = arith.constant 0 : index
    %c0_22 = arith.constant 0 : index
    %22 = vector.load %arg11[%c0_21, %c0_22] : memref<1x128xf32, #tpu.memory_space<vmem>>, vector<1x128xf32>
    %c0_23 = arith.constant 0 : index
    %c0_24 = arith.constant 0 : index
    %23 = vector.load %arg12[%c0_23, %c0_24] : memref<128x256xbf16, #tpu.memory_space<vmem>>, vector<128x256xbf16>
    %c0_25 = arith.constant 0 : index
    %c0_26 = arith.constant 0 : index
    %24 = vector.load %arg13[%c0_25, %c0_26] : memref<1x256xf32, #tpu.memory_space<vmem>>, vector<1x256xf32>
    %c0_27 = arith.constant 0 : index
    %c0_28 = arith.constant 0 : index
    %25 = vector.load %arg14[%c0_27, %c0_28] : memref<256x128xbf16, #tpu.memory_space<vmem>>, vector<256x128xbf16>
    %c0_29 = arith.constant 0 : index
    %c0_30 = arith.constant 0 : index
    %26 = vector.load %arg15[%c0_29, %c0_30] : memref<1x128xf32, #tpu.memory_space<vmem>>, vector<1x128xf32>
    %c0_31 = arith.constant 0 : index
    %c0_32 = arith.constant 0 : index
    %27 = vector.load %arg16[%c0_31, %c0_32] : memref<1x128xf32, #tpu.memory_space<vmem>>, vector<1x128xf32>
    %c0_33 = arith.constant 0 : index
    %c0_34 = arith.constant 0 : index
    %28 = vector.load %arg17[%c0_33, %c0_34] : memref<1x128xf32, #tpu.memory_space<vmem>>, vector<1x128xf32>
    %c0_i32 = arith.constant 0 : i32
    %c6_i32 = arith.constant 6 : i32
    %29 = arith.addi %c0_i32, %c6_i32 : i32
    %c1_i32 = arith.constant 1 : i32
    %30 = scf.for %arg23 = %c0_i32 to %29 step %c1_i32 iter_args(%arg24 = %14) -> (vector<32x128xf32>)  : i32 {
      %65 = arith.truncf %arg24 : vector<32x128xf32> to vector<32x128xbf16>
      %cst_51 = arith.constant dense<0.000000e+00> : vector<32x384xf32>
      %66 = tpu.matmul %65, %17, %cst_51 {dimension_numbers = #tpu.dot_dimension_numbers<[1], [0], [0], [1], [0, 0, 1, 1], [], []>} : vector<32x128xbf16>, vector<128x384xbf16>, vector<32x384xf32> -> vector<32x384xf32>
      %67 = vector.broadcast %18 : vector<1x384xf32> to vector<32x384xf32>
      %68 = arith.addf %66, %67 : vector<32x384xf32>
      %69 = vector.extract_strided_slice %68 {offsets = [0, 0], sizes = [32, 128], strides = [1, 1]} : vector<32x384xf32> to vector<32x128xf32>
      %70 = vector.extract_strided_slice %68 {offsets = [0, 128], sizes = [32, 128], strides = [1, 1]} : vector<32x384xf32> to vector<32x128xf32>
      %71 = vector.extract_strided_slice %68 {offsets = [0, 256], sizes = [32, 128], strides = [1, 1]} : vector<32x384xf32> to vector<32x128xf32>
      %c16_i32 = arith.constant 16 : i32
      %72 = tpu.dynamic_rotate %70 by %c16_i32 dim 0 : vector<32x128xf32>, i32 -> vector<32x128xf32>
      %c16_i32_52 = arith.constant 16 : i32
      %73 = tpu.dynamic_rotate %71 by %c16_i32_52 dim 0 : vector<32x128xf32>, i32 -> vector<32x128xf32>
      %74 = arith.mulf %69, %70 : vector<32x128xf32>
      %75 = arith.mulf %69, %72 : vector<32x128xf32>
      %76 = tpu.concatenate %74, %75 in 0 : vector<32x128xf32>, vector<32x128xf32> -> vector<64x128xf32>
      %77 = arith.truncf %76 : vector<64x128xf32> to vector<64x128xbf16>
      %cst_53 = arith.constant dense<0.000000e+00> : vector<64x4xf32>
      %78 = tpu.matmul %77, %15, %cst_53 {dimension_numbers = #tpu.dot_dimension_numbers<[1], [0], [0], [1], [0, 0, 1, 1], [], []>} : vector<64x128xbf16>, vector<128x4xbf16>, vector<64x4xf32> -> vector<64x4xf32>
      %cst_54 = arith.constant 0.176776692 : f32
      %79 = vector.broadcast %cst_54 : f32 to vector<64x4xf32>
      %80 = arith.mulf %78, %79 : vector<64x4xf32>
      %81 = vector.extract_strided_slice %80 {offsets = [0, 0], sizes = [32, 4], strides = [1, 1]} : vector<64x4xf32> to vector<32x4xf32>
      %82 = vector.extract_strided_slice %80 {offsets = [32, 0], sizes = [32, 4], strides = [1, 1]} : vector<64x4xf32> to vector<32x4xf32>
      %83 = arith.maximumf %81, %82 : vector<32x4xf32>
      %84 = arith.subf %81, %83 : vector<32x4xf32>
      %85 = math.exp %84 : vector<32x4xf32>
      %86 = arith.subf %82, %83 : vector<32x4xf32>
      %87 = math.exp %86 : vector<32x4xf32>
      %88 = arith.addf %85, %87 : vector<32x4xf32>
      %89 = tpu.reciprocal %88 {approx = true} : vector<32x4xf32> -> vector<32x4xf32>
      %90 = arith.mulf %85, %89 : vector<32x4xf32>
      %91 = arith.mulf %87, %89 : vector<32x4xf32>
      %92 = tpu.concatenate %90, %91 in 0 : vector<32x4xf32>, vector<32x4xf32> -> vector<64x4xf32>
      %93 = arith.truncf %92 : vector<64x4xf32> to vector<64x4xbf16>
      %cst_55 = arith.constant dense<0.000000e+00> : vector<64x128xf32>
      %94 = tpu.matmul %93, %16, %cst_55 {dimension_numbers = #tpu.dot_dimension_numbers<[1], [0], [0], [1], [0, 0, 1, 1], [], []>} : vector<64x4xbf16>, vector<4x128xbf16>, vector<64x128xf32> -> vector<64x128xf32>
      %95 = vector.extract_strided_slice %94 {offsets = [0, 0], sizes = [32, 128], strides = [1, 1]} : vector<64x128xf32> to vector<32x128xf32>
      %96 = arith.mulf %95, %71 : vector<32x128xf32>
      %97 = vector.extract_strided_slice %94 {offsets = [32, 0], sizes = [32, 128], strides = [1, 1]} : vector<64x128xf32> to vector<32x128xf32>
      %98 = arith.mulf %97, %73 : vector<32x128xf32>
      %99 = arith.addf %96, %98 : vector<32x128xf32>
      %100 = arith.truncf %99 : vector<32x128xf32> to vector<32x128xbf16>
      %cst_56 = arith.constant dense<0.000000e+00> : vector<32x128xf32>
      %101 = tpu.matmul %100, %19, %cst_56 {dimension_numbers = #tpu.dot_dimension_numbers<[1], [0], [0], [1], [0, 0, 1, 1], [], []>} : vector<32x128xbf16>, vector<128x128xbf16>, vector<32x128xf32> -> vector<32x128xf32>
      %102 = arith.addf %arg24, %101 : vector<32x128xf32>
      %103 = vector.broadcast %20 : vector<1x128xf32> to vector<32x128xf32>
      %104 = arith.addf %102, %103 : vector<32x128xf32>
      %cst_57 = arith.constant dense<0.000000e+00> : vector<32xf32>
      %105 = vector.multi_reduction <add>, %104, %cst_57 [1] : vector<32x128xf32> to vector<32xf32>
      %106 = vector.shape_cast %105 : vector<32xf32> to vector<32x1xf32>
      %cst_58 = arith.constant 1.280000e+02 : f32
      %107 = vector.broadcast %cst_58 : f32 to vector<32x1xf32>
      %108 = arith.divf %106, %107 : vector<32x1xf32>
      %109 = vector.broadcast %108 : vector<32x1xf32> to vector<32x128xf32>
      %110 = arith.subf %104, %109 : vector<32x128xf32>
      %111 = arith.mulf %110, %110 : vector<32x128xf32>
      %cst_59 = arith.constant dense<0.000000e+00> : vector<32xf32>
      %112 = vector.multi_reduction <add>, %111, %cst_59 [1] : vector<32x128xf32> to vector<32xf32>
      %113 = vector.shape_cast %112 : vector<32xf32> to vector<32x1xf32>
      %cst_60 = arith.constant 1.280000e+02 : f32
      %114 = vector.broadcast %cst_60 : f32 to vector<32x1xf32>
      %115 = arith.divf %113, %114 : vector<32x1xf32>
      %116 = vector.broadcast %108 : vector<32x1xf32> to vector<32x128xf32>
      %117 = arith.subf %104, %116 : vector<32x128xf32>
      %cst_61 = arith.constant 9.99999974E-6 : f32
      %118 = vector.broadcast %cst_61 : f32 to vector<32x1xf32>
      %119 = arith.addf %115, %118 : vector<32x1xf32>
      %120 = math.rsqrt %119 : vector<32x1xf32>
      %121 = vector.broadcast %120 : vector<32x1xf32> to vector<32x128xf32>
      %122 = arith.mulf %117, %121 : vector<32x128xf32>
      %123 = vector.broadcast %21 : vector<1x128xf32> to vector<32x128xf32>
      %124 = arith.mulf %122, %123 : vector<32x128xf32>
      %125 = vector.broadcast %22 : vector<1x128xf32> to vector<32x128xf32>
      %126 = arith.addf %124, %125 : vector<32x128xf32>
      %127 = arith.truncf %126 : vector<32x128xf32> to vector<32x128xbf16>
      %cst_62 = arith.constant dense<0.000000e+00> : vector<32x256xf32>
      %128 = tpu.matmul %127, %23, %cst_62 {dimension_numbers = #tpu.dot_dimension_numbers<[1], [0], [0], [1], [0, 0, 1, 1], [], []>} : vector<32x128xbf16>, vector<128x256xbf16>, vector<32x256xf32> -> vector<32x256xf32>
      %129 = vector.broadcast %24 : vector<1x256xf32> to vector<32x256xf32>
      %130 = arith.addf %128, %129 : vector<32x256xf32>
      %cst_63 = arith.constant 0.000000e+00 : f32
      %131 = vector.broadcast %cst_63 : f32 to vector<32x256xf32>
      %132 = arith.maximumf %130, %131 : vector<32x256xf32>
      %133 = arith.truncf %132 : vector<32x256xf32> to vector<32x256xbf16>
      %cst_64 = arith.constant dense<0.000000e+00> : vector<32x128xf32>
      %134 = tpu.matmul %133, %25, %cst_64 {dimension_numbers = #tpu.dot_dimension_numbers<[1], [0], [0], [1], [0, 0, 1, 1], [], []>} : vector<32x256xbf16>, vector<256x128xbf16>, vector<32x128xf32> -> vector<32x128xf32>
      %135 = arith.addf %126, %134 : vector<32x128xf32>
      %136 = vector.broadcast %26 : vector<1x128xf32> to vector<32x128xf32>
      %137 = arith.addf %135, %136 : vector<32x128xf32>
      %cst_65 = arith.constant dense<0.000000e+00> : vector<32xf32>
      %138 = vector.multi_reduction <add>, %137, %cst_65 [1] : vector<32x128xf32> to vector<32xf32>
      %139 = vector.shape_cast %138 : vector<32xf32> to vector<32x1xf32>
      %cst_66 = arith.constant 1.280000e+02 : f32
      %140 = vector.broadcast %cst_66 : f32 to vector<32x1xf32>
      %141 = arith.divf %139, %140 : vector<32x1xf32>
      %142 = vector.broadcast %141 : vector<32x1xf32> to vector<32x128xf32>
      %143 = arith.subf %137, %142 : vector<32x128xf32>
      %144 = arith.mulf %143, %143 : vector<32x128xf32>
      %cst_67 = arith.constant dense<0.000000e+00> : vector<32xf32>
      %145 = vector.multi_reduction <add>, %144, %cst_67 [1] : vector<32x128xf32> to vector<32xf32>
      %146 = vector.shape_cast %145 : vector<32xf32> to vector<32x1xf32>
      %cst_68 = arith.constant 1.280000e+02 : f32
      %147 = vector.broadcast %cst_68 : f32 to vector<32x1xf32>
      %148 = arith.divf %146, %147 : vector<32x1xf32>
      %149 = vector.broadcast %141 : vector<32x1xf32> to vector<32x128xf32>
      %150 = arith.subf %137, %149 : vector<32x128xf32>
      %cst_69 = arith.constant 9.99999974E-6 : f32
      %151 = vector.broadcast %cst_69 : f32 to vector<32x1xf32>
      %152 = arith.addf %148, %151 : vector<32x1xf32>
      %153 = math.rsqrt %152 : vector<32x1xf32>
      %154 = vector.broadcast %153 : vector<32x1xf32> to vector<32x128xf32>
      %155 = arith.mulf %150, %154 : vector<32x128xf32>
      %156 = vector.broadcast %27 : vector<1x128xf32> to vector<32x128xf32>
      %157 = arith.mulf %155, %156 : vector<32x128xf32>
      %158 = vector.broadcast %28 : vector<1x128xf32> to vector<32x128xf32>
      %159 = arith.addf %157, %158 : vector<32x128xf32>
      scf.yield %159 : vector<32x128xf32>
    }
    %31 = vector.extract_strided_slice %30 {offsets = [8, 0], sizes = [1, 128], strides = [1, 1]} : vector<32x128xf32> to vector<1x128xf32>
    %32 = vector.extract_strided_slice %30 {offsets = [24, 0], sizes = [1, 128], strides = [1, 1]} : vector<32x128xf32> to vector<1x128xf32>
    %33 = tpu.concatenate %31, %32 in 0 : vector<1x128xf32>, vector<1x128xf32> -> vector<2x128xf32>
    %c0_35 = arith.constant 0 : index
    %c0_36 = arith.constant 0 : index
    %34 = vector.load %arg18[%c0_35, %c0_36] : memref<1x128xf32, #tpu.memory_space<vmem>>, vector<1x128xf32>
    %c0_37 = arith.constant 0 : index
    %c0_38 = arith.constant 0 : index
    %35 = vector.load %arg19[%c0_37, %c0_38] : memref<1x128xf32, #tpu.memory_space<vmem>>, vector<1x128xf32>
    %cst_39 = arith.constant dense<0.000000e+00> : vector<2xf32>
    %36 = vector.multi_reduction <add>, %33, %cst_39 [1] : vector<2x128xf32> to vector<2xf32>
    %37 = vector.shape_cast %36 : vector<2xf32> to vector<2x1xf32>
    %cst_40 = arith.constant 1.280000e+02 : f32
    %38 = vector.broadcast %cst_40 : f32 to vector<2x1xf32>
    %39 = arith.divf %37, %38 : vector<2x1xf32>
    %40 = vector.broadcast %39 : vector<2x1xf32> to vector<2x128xf32>
    %41 = arith.subf %33, %40 : vector<2x128xf32>
    %42 = arith.mulf %41, %41 : vector<2x128xf32>
    %cst_41 = arith.constant dense<0.000000e+00> : vector<2xf32>
    %43 = vector.multi_reduction <add>, %42, %cst_41 [1] : vector<2x128xf32> to vector<2xf32>
    %44 = vector.shape_cast %43 : vector<2xf32> to vector<2x1xf32>
    %cst_42 = arith.constant 1.280000e+02 : f32
    %45 = vector.broadcast %cst_42 : f32 to vector<2x1xf32>
    %46 = arith.divf %44, %45 : vector<2x1xf32>
    %47 = vector.broadcast %39 : vector<2x1xf32> to vector<2x128xf32>
    %48 = arith.subf %33, %47 : vector<2x128xf32>
    %cst_43 = arith.constant 9.99999974E-6 : f32
    %49 = vector.broadcast %cst_43 : f32 to vector<2x1xf32>
    %50 = arith.addf %46, %49 : vector<2x1xf32>
    %51 = math.rsqrt %50 : vector<2x1xf32>
    %52 = vector.broadcast %51 : vector<2x1xf32> to vector<2x128xf32>
    %53 = arith.mulf %48, %52 : vector<2x128xf32>
    %54 = vector.broadcast %34 : vector<1x128xf32> to vector<2x128xf32>
    %55 = arith.mulf %53, %54 : vector<2x128xf32>
    %56 = vector.broadcast %35 : vector<1x128xf32> to vector<2x128xf32>
    %57 = arith.addf %55, %56 : vector<2x128xf32>
    %c0_44 = arith.constant 0 : index
    %c0_45 = arith.constant 0 : index
    %58 = vector.load %arg20[%c0_44, %c0_45] : memref<128x2xbf16, #tpu.memory_space<vmem>>, vector<128x2xbf16>
    %59 = arith.truncf %57 : vector<2x128xf32> to vector<2x128xbf16>
    %cst_46 = arith.constant dense<0.000000e+00> : vector<2x2xf32>
    %60 = tpu.matmul %59, %58, %cst_46 {dimension_numbers = #tpu.dot_dimension_numbers<[1], [0], [0], [1], [0, 0, 1, 1], [], []>} : vector<2x128xbf16>, vector<128x2xbf16>, vector<2x2xf32> -> vector<2x2xf32>
    %c0_47 = arith.constant 0 : index
    %c0_48 = arith.constant 0 : index
    %61 = vector.load %arg21[%c0_47, %c0_48] : memref<1x2xf32, #tpu.memory_space<vmem>>, vector<1x2xf32>
    %62 = vector.broadcast %61 : vector<1x2xf32> to vector<2x2xf32>
    %63 = arith.addf %60, %62 : vector<2x2xf32>
    %c0_49 = arith.constant 0 : index
    %c0_50 = arith.constant 0 : index
    %64 = vector.load %arg22[%c0_49, %c0_50] : memref<2x2xf32, #tpu.memory_space<vmem>>, vector<2x2xf32>
    tpu.vector_store %arg22[%c0_49, %c0_50], %63 {strides = array<i32>} : memref<2x2xf32, #tpu.memory_space<vmem>>, vector<2x2xf32>,
    return
  }
}

</mosaic_0001>

<llo_original>
// kernel: timesformer_forward.1
$region0: #{timesformer_forward.1}
  #allocation0 [shape = 'u32[]', space=smem, size = 0x4, offset = 0x4, fixed_abs, tag = 'smem constant byte address 0x4 - core index']
  #allocation1 [shape = 'u32[72,128]{1,0:T(1,128)}', space=vmem, size = 0x9000, scoped, tag = 'internal scratch']
  %s0 = inlined_call_operand.vmem [shape: f32[16,192], index: 0, kind: input, shape index: {}]
  %s1 = inlined_call_operand.vmem [shape: bf16[192,128], index: 1, kind: input, shape index: {}]
  %s2 = inlined_call_operand.vmem [shape: f32[1,128], index: 2, kind: input, shape index: {}]
  %s3 = inlined_call_operand.vmem [shape: f32[16,128], index: 3, kind: input, shape index: {}]
  %s4 = inlined_call_operand.vmem [shape: bf16[128,4], index: 4, kind: input, shape index: {}]
  %s5 = inlined_call_operand.vmem [shape: bf16[4,128], index: 5, kind: input, shape index: {}]
  %s6 = inlined_call_operand.vmem [shape: bf16[128,384], index: 6, kind: input, shape index: {}]
  %s7 = inlined_call_operand.vmem [shape: f32[1,384], index: 7, kind: input, shape index: {}]
  %s8 = inlined_call_operand.vmem [shape: bf16[128,128], index: 8, kind: input, shape index: {}]
  %s9 = inlined_call_operand.vmem [shape: f32[1,128], index: 9, kind: input, shape index: {}]
  %s10 = inlined_call_operand.vmem [shape: f32[1,128], index: 10, kind: input, shape index: {}]
  %s11 = inlined_call_operand.vmem [shape: f32[1,128], index: 11, kind: input, shape index: {}]
  %s12 = inlined_call_operand.vmem [shape: bf16[128,256], index: 12, kind: input, shape index: {}]
  %s13 = inlined_call_operand.vmem [shape: f32[1,256], index: 13, kind: input, shape index: {}]
  %s14 = inlined_call_operand.vmem [shape: bf16[256,128], index: 14, kind: input, shape index: {}]
  %s15 = inlined_call_operand.vmem [shape: f32[1,128], index: 15, kind: input, shape index: {}]
  %s16 = inlined_call_operand.vmem [shape: f32[1,128], index: 16, kind: input, shape index: {}]
  %s17 = inlined_call_operand.vmem [shape: f32[1,128], index: 17, kind: input, shape index: {}]
  %s18 = inlined_call_operand.vmem [shape: f32[1,128], index: 18, kind: input, shape index: {}]
  %s19 = inlined_call_operand.vmem [shape: f32[1,128], index: 19, kind: input, shape index: {}]
  %s20 = inlined_call_operand.vmem [shape: bf16[128,2], index: 20, kind: input, shape index: {}]
  %s21 = inlined_call_operand.vmem [shape: f32[1,2], index: 21, kind: input, shape index: {}]
  %s22 = inlined_call_operand.vmem [shape: f32[2,2], index: 22, kind: output, shape index: {}]
  %s23 = sld [smem:[#allocation0]]
  $region105: #{timesformer_forward.1} parent=0
    _
  %s25 = ssub.s32 1, %s23
  %s26 = scalar_select 0, %s25, %s23
  // Predicated region
  $region2: #{timesformer_forward.1} parent=0 // pred_check
    _
  $region3: #{timesformer_forward.1} parent=0 // pred_check_branch
    %28 = sbr.rel (0) target = $region5
  $region4: #{timesformer_forward.1} parent=0 // pred_region
    _
  $region5: #{timesformer_forward.1} parent=0 // pred_fallthru
    _
  // Predicated region
  $region6: #{timesformer_forward.1} parent=0 // pred_check
    _
  $region7: #{timesformer_forward.1} parent=0 // pred_check_branch
    %30 = sbr.rel (0) target = $region9
  $region8: #{timesformer_forward.1} parent=0 // pred_region
    _
  $region9: #{timesformer_forward.1} parent=0 // pred_fallthru
    _
  // Predicated region
  $region10: #{timesformer_forward.1} parent=0 // pred_check
    _
  $region11: #{timesformer_forward.1} parent=0 // pred_check_branch
    %32 = sbr.rel (0) target = $region13
  $region12: #{timesformer_forward.1} parent=0 // pred_region
    _
  $region13: #{timesformer_forward.1} parent=0 // pred_fallthru
    _
  // Predicated region
  $region14: #{timesformer_forward.1} parent=0 // pred_check
    _
  $region15: #{timesformer_forward.1} parent=0 // pred_check_branch
    %34 = sbr.rel (0) target = $region17
  $region16: #{timesformer_forward.1} parent=0 // pred_region
    _
  $region17: #{timesformer_forward.1} parent=0 // pred_fallthru
    _
  // Predicated region
  $region18: #{timesformer_forward.1} parent=0 // pred_check
    _
  $region19: #{timesformer_forward.1} parent=0 // pred_check_branch
    %36 = sbr.rel (0) target = $region21
  $region20: #{timesformer_forward.1} parent=0 // pred_region
    _
  $region21: #{timesformer_forward.1} parent=0 // pred_fallthru
    _
  // Predicated region
  $region22: #{timesformer_forward.1} parent=0 // pred_check
    _
  $region23: #{timesformer_forward.1} parent=0 // pred_check_branch
    %38 = sbr.rel (0) target = $region25
  $region24: #{timesformer_forward.1} parent=0 // pred_region
    _
  $region25: #{timesformer_forward.1} parent=0 // pred_fallthru
    _
  // Predicated region
  $region26: #{timesformer_forward.1} parent=0 // pred_check
    _
  $region27: #{timesformer_forward.1} parent=0 // pred_check_branch
    %40 = sbr.rel (0) target = $region29
  $region28: #{timesformer_forward.1} parent=0 // pred_region
    _
  $region29: #{timesformer_forward.1} parent=0 // pred_fallthru
    _
  // Predicated region
  $region30: #{timesformer_forward.1} parent=0 // pred_check
    _
  $region31: #{timesformer_forward.1} parent=0 // pred_check_branch
    %42 = sbr.rel (0) target = $region33
  $region32: #{timesformer_forward.1} parent=0 // pred_region
    _
  $region33: #{timesformer_forward.1} parent=0 // pred_fallthru
    _
  // Predicated region
  $region34: #{timesformer_forward.1} parent=0 // pred_check
    _
  $region35: #{timesformer_forward.1} parent=0 // pred_check_branch
    %44 = sbr.rel (0) target = $region37
  $region36: #{timesformer_forward.1} parent=0 // pred_region
    _
  $region37: #{timesformer_forward.1} parent=0 // pred_fallthru
    _
  // Predicated region
  $region38: #{timesformer_forward.1} parent=0 // pred_check
    _
  $region39: #{timesformer_forward.1} parent=0 // pred_check_branch
    %46 = sbr.rel (0) target = $region41
  $region40: #{timesformer_forward.1} parent=0 // pred_region
    _
  $region41: #{timesformer_forward.1} parent=0 // pred_fallthru
    _
  // Predicated region
  $region42: #{timesformer_forward.1} parent=0 // pred_check
    _
  $region43: #{timesformer_forward.1} parent=0 // pred_check_branch
    %48 = sbr.rel (0) target = $region45
  $region44: #{timesformer_forward.1} parent=0 // pred_region
    _
  $region45: #{timesformer_forward.1} parent=0 // pred_fallthru
    _
  // Predicated region
  $region46: #{timesformer_forward.1} parent=0 // pred_check
    _
  $region47: #{timesformer_forward.1} parent=0 // pred_check_branch
    %50 = sbr.rel (0) target = $region49
  $region48: #{timesformer_forward.1} parent=0 // pred_region
    _
  $region49: #{timesformer_forward.1} parent=0 // pred_fallthru
    _
  // Predicated region
  $region50: #{timesformer_forward.1} parent=0 // pred_check
    _
  $region51: #{timesformer_forward.1} parent=0 // pred_check_branch
    %52 = sbr.rel (0) target = $region53
  $region52: #{timesformer_forward.1} parent=0 // pred_region
    _
  $region53: #{timesformer_forward.1} parent=0 // pred_fallthru
    _
  // Predicated region
  $region54: #{timesformer_forward.1} parent=0 // pred_check
    _
  $region55: #{timesformer_forward.1} parent=0 // pred_check_branch
    %54 = sbr.rel (0) target = $region57
  $region56: #{timesformer_forward.1} parent=0 // pred_region
    _
  $region57: #{timesformer_forward.1} parent=0 // pred_fallthru
    _
  // Predicated region
  $region58: #{timesformer_forward.1} parent=0 // pred_check
    _
  $region59: #{timesformer_forward.1} parent=0 // pred_check_branch
    %56 = sbr.rel (0) target = $region61
  $region60: #{timesformer_forward.1} parent=0 // pred_region
    _
  $region61: #{timesformer_forward.1} parent=0 // pred_fallthru
    _
  // Predicated region
  $region62: #{timesformer_forward.1} parent=0 // pred_check
    _
  $region63: #{timesformer_forward.1} parent=0 // pred_check_branch
    %58 = sbr.rel (0) target = $region65
  $region64: #{timesformer_forward.1} parent=0 // pred_region
    _
  $region65: #{timesformer_forward.1} parent=0 // pred_fallthru
    _
  // Predicated region
  $region66: #{timesformer_forward.1} parent=0 // pred_check
    _
  $region67: #{timesformer_forward.1} parent=0 // pred_check_branch
    %60 = sbr.rel (0) target = $region69
  $region68: #{timesformer_forward.1} parent=0 // pred_region
    _
  $region69: #{timesformer_forward.1} parent=0 // pred_fallthru
    _
  // Predicated region
  $region70: #{timesformer_forward.1} parent=0 // pred_check
    _
  $region71: #{timesformer_forward.1} parent=0 // pred_check_branch
    %62 = sbr.rel (0) target = $region73
  $region72: #{timesformer_forward.1} parent=0 // pred_region
    _
  $region73: #{timesformer_forward.1} parent=0 // pred_fallthru
    _
  // Predicated region
  $region74: #{timesformer_forward.1} parent=0 // pred_check
    _
  $region75: #{timesformer_forward.1} parent=0 // pred_check_branch
    %64 = sbr.rel (0) target = $region77
  $region76: #{timesformer_forward.1} parent=0 // pred_region
    _
  $region77: #{timesformer_forward.1} parent=0 // pred_fallthru
    _
  // Predicated region
  $region78: #{timesformer_forward.1} parent=0 // pred_check
    _
  $region79: #{timesformer_forward.1} parent=0 // pred_check_branch
    %66 = sbr.rel (0) target = $region81
  $region80: #{timesformer_forward.1} parent=0 // pred_region
    _
  $region81: #{timesformer_forward.1} parent=0 // pred_fallthru
    _
  // Predicated region
  $region82: #{timesformer_forward.1} parent=0 // pred_check
    _
  $region83: #{timesformer_forward.1} parent=0 // pred_check_branch
    %68 = sbr.rel (0) target = $region85
  $region84: #{timesformer_forward.1} parent=0 // pred_region
    _
  $region85: #{timesformer_forward.1} parent=0 // pred_fallthru
    _
  // Predicated region
  $region86: #{timesformer_forward.1} parent=0 // pred_check
    _
  $region87: #{timesformer_forward.1} parent=0 // pred_check_branch
    %70 = sbr.rel (0) target = $region89
  $region88: #{timesformer_forward.1} parent=0 // pred_region
    _
  $region89: #{timesformer_forward.1} parent=0 // pred_fallthru
    _
  %v72 = vld [vmem:[%s0] sm:$0xff]
  %v73 = vld [vmem:[%s0 + $0x8] sm:$0xff]
  %v74 = vld [vmem:[%s0 + $0x10] sm:$0xff]
  %v75 = vld [vmem:[%s0 + $0x18] sm:$0xff]
  %v76 = vld [vmem:[%s1] sm:$0xf]
  %v77 = vld [vmem:[%s1 + $0x4] sm:$0xf]
  %v78 = vld [vmem:[%s1 + $0x8] sm:$0xf]
  %v79 = vld [vmem:[%s1 + $0xc] sm:$0xf]
  %v80 = vld [vmem:[%s1 + $0x10] sm:$0xf]
  %v81 = vld [vmem:[%s1 + $0x14] sm:$0xf]
  %v82 = vld [vmem:[%s1 + $0x18] sm:$0xf]
  %v83 = vld [vmem:[%s1 + $0x1c] sm:$0xf]
  %v84 = vld [vmem:[%s1 + $0x20] sm:$0xf]
  %v85 = vld [vmem:[%s1 + $0x24] sm:$0xf]
  %v86 = vld [vmem:[%s1 + $0x28] sm:$0xf]
  %v87 = vld [vmem:[%s1 + $0x2c] sm:$0xf]
  %v88 = vld [vmem:[%s1 + $0x30] sm:$0xf]
  %v89 = vld [vmem:[%s1 + $0x34] sm:$0xf]
  %v90 = vld [vmem:[%s1 + $0x38] sm:$0xf]
  %v91 = vld [vmem:[%s1 + $0x3c] sm:$0xf]
  %v92 = vld [vmem:[%s1 + $0x40] sm:$0xf]
  %v93 = vld [vmem:[%s1 + $0x44] sm:$0xf]
  %v94 = vld [vmem:[%s1 + $0x48] sm:$0xf]
  %v95 = vld [vmem:[%s1 + $0x4c] sm:$0xf]
  %v96 = vld [vmem:[%s1 + $0x50] sm:$0xf]
  %v97 = vld [vmem:[%s1 + $0x54] sm:$0xf]
  %v98 = vld [vmem:[%s1 + $0x58] sm:$0xf]
  %v99 = vld [vmem:[%s1 + $0x5c] sm:$0xf]
  %v100 = vpack.c.bf16 %v74, %v72
  %v101 = vpack.c.bf16 %v75, %v73
  %v102 = vld [vmem:[%s2] sm:$0x1]
  %v104 = vperm.slane %v102, 0
  %v130 = vunpack.c.l.b16 %v76
  %v131 = vunpack.c.l.b16 %v77
  %v132 = vunpack.c.l.b16 %v78
  %v133 = vunpack.c.l.b16 %v79
  %v134 = vunpack.c.l.b16 %v80
  %v135 = vunpack.c.l.b16 %v81
  %v136 = vunpack.c.l.b16 %v82
  %v137 = vunpack.c.l.b16 %v83
  %v138 = vunpack.c.l.b16 %v84
  %v139 = vunpack.c.l.b16 %v85
  %v140 = vunpack.c.l.b16 %v86
  %v141 = vunpack.c.l.b16 %v87
  %v142 = vunpack.c.l.b16 %v88
  %v143 = vunpack.c.l.b16 %v89
  %v144 = vunpack.c.l.b16 %v90
  %v145 = vunpack.c.l.b16 %v91
  %v146 = vunpack.c.l.b16 %v92
  %v147 = vunpack.c.l.b16 %v93
  %v148 = vunpack.c.l.b16 %v94
  %v149 = vunpack.c.l.b16 %v95
  %v150 = vunpack.c.l.b16 %v96
  %v151 = vunpack.c.l.b16 %v97
  %v152 = vunpack.c.l.b16 %v98
  %v153 = vunpack.c.l.b16 %v99
  %v154 = vpack.c.b16 %v131, %v130
  %v155 = vpack.c.b16 %v133, %v132
  %v156 = vpack.c.b16 %v135, %v134
  %v157 = vpack.c.b16 %v137, %v136
  %v158 = vpack.c.b16 %v139, %v138
  %v159 = vpack.c.b16 %v141, %v140
  %v160 = vpack.c.b16 %v143, %v142
  %v161 = vpack.c.b16 %v145, %v144
  %v162 = vpack.c.b16 %v147, %v146
  %v163 = vpack.c.b16 %v149, %v148
  %v164 = vpack.c.b16 %v151, %v150
  %v165 = vpack.c.b16 %v153, %v152
  %vm178 = vcmask 523264
  %v180 = vsel %vm178, %v101, 0
  %182 = vmatpush.bf16.msra.mxu0 %v161
  %183 = vmatpush.bf16.msra.mxu0 %v160
  %184 = vmatpush.bf16.msra.mxu0 %v159
  %185 = vmatpush.bf16.msra.mxu0 %v158
  %186 = vmatpush.bf16.msra.mxu0 %v157
  %187 = vmatpush.bf16.msra.mxu0 %v156
  %188 = vmatpush.bf16.msra.mxu0 %v155
  %189 = vmatpush.bf16.msra.mxu0 %v154
  %190 = vmatmul.bf16.gmra.mxu0 %v100
  %v191 = vpop.f32.mrf.mxu0
  %v192 = vadd.f32 %v104, %v191
  %v193 = vpop.f32.mrf.mxu0
  %v194 = vadd.f32 %v104, %v193
  %195 = vdwg.mxu0
  %196 = vmatpush.bf16.msra.mxu0 0
  %197 = vmatpush.bf16.msra.mxu0 0
  %198 = vmatpush.bf16.msra.mxu0 0
  %199 = vmatpush.bf16.msra.mxu0 0
  %200 = vmatpush.bf16.msra.mxu0 %v165
  %201 = vmatpush.bf16.msra.mxu0 %v164
  %202 = vmatpush.bf16.msra.mxu0 %v163
  %203 = vmatpush.bf16.msra.mxu0 %v162
  %204 = vmatmul.bf16.gmra.mxu0 %v180
  %v205 = vpop.f32.mrf.mxu0
  %v206 = vadd.f32 %v192, %v205
  %v207 = vpop.f32.mrf.mxu0
  %v208 = vadd.f32 %v194, %v207
  %209 = vdwg.mxu0
  %v210 = vld [vmem:[%s3] sm:$0xff]
  %v211 = vld [vmem:[%s3 + $0x8] sm:$0xff]
  %v212 = vadd.f32 %v206, %v210
  %v213 = vadd.f32 %v208, %v210
  %v214 = vld [vmem:[%s4] sm:$0xf]
  %v215 = vld [vmem:[%s4 + $0x4] sm:$0xf]
  %v216 = vld [vmem:[%s4 + $0x8] sm:$0xf]
  %v217 = vld [vmem:[%s4 + $0xc] sm:$0xf]
  %v218 = vld [vmem:[%s4 + $0x10] sm:$0xf]
  %v219 = vld [vmem:[%s4 + $0x14] sm:$0xf]
  %v220 = vld [vmem:[%s4 + $0x18] sm:$0xf]
  %v221 = vld [vmem:[%s4 + $0x1c] sm:$0xf]
  %v222 = vld [vmem:[%s4 + $0x20] sm:$0xf]
  %v223 = vld [vmem:[%s4 + $0x24] sm:$0xf]
  %v224 = vld [vmem:[%s4 + $0x28] sm:$0xf]
  %v225 = vld [vmem:[%s4 + $0x2c] sm:$0xf]
  %v226 = vld [vmem:[%s4 + $0x30] sm:$0xf]
  %v227 = vld [vmem:[%s4 + $0x34] sm:$0xf]
  %v228 = vld [vmem:[%s4 + $0x38] sm:$0xf]
  %v229 = vld [vmem:[%s4 + $0x3c] sm:$0xf]
  %v230 = vld [vmem:[%s5] sm:$0x3]
  %v231 = vld [vmem:[%s6] sm:$0xff]
  %v232 = vld [vmem:[%s6 + $0x8] sm:$0xf]
  %v233 = vld [vmem:[%s6 + $0xc] sm:$0xff]
  %v234 = vld [vmem:[%s6 + $0x14] sm:$0xf]
  %v235 = vld [vmem:[%s6 + $0x18] sm:$0xff]
  %v236 = vld [vmem:[%s6 + $0x20] sm:$0xf]
  %v237 = vld [vmem:[%s6 + $0x24] sm:$0xff]
  %v238 = vld [vmem:[%s6 + $0x2c] sm:$0xf]
  %v239 = vld [vmem:[%s6 + $0x30] sm:$0xff]
  %v240 = vld [vmem:[%s6 + $0x38] sm:$0xf]
  %v241 = vld [vmem:[%s6 + $0x3c] sm:$0xff]
  %v242 = vld [vmem:[%s6 + $0x44] sm:$0xf]
  %v243 = vld [vmem:[%s6 + $0x48] sm:$0xff]
  %v244 = vld [vmem:[%s6 + $0x50] sm:$0xf]
  %v245 = vld [vmem:[%s6 + $0x54] sm:$0xff]
  %v246 = vld [vmem:[%s6 + $0x5c] sm:$0xf]
  %v247 = vld [vmem:[%s6 + $0x60] sm:$0xff]
  %v248 = vld [vmem:[%s6 + $0x68] sm:$0xf]
  %v249 = vld [vmem:[%s6 + $0x6c] sm:$0xff]
  %v250 = vld [vmem:[%s6 + $0x74] sm:$0xf]
  %v251 = vld [vmem:[%s6 + $0x78] sm:$0xff]
  %v252 = vld [vmem:[%s6 + $0x80] sm:$0xf]
  %v253 = vld [vmem:[%s6 + $0x84] sm:$0xff]
  %v254 = vld [vmem:[%s6 + $0x8c] sm:$0xf]
  %v255 = vld [vmem:[%s6 + $0x90] sm:$0xff]
  %v256 = vld [vmem:[%s6 + $0x98] sm:$0xf]
  %v257 = vld [vmem:[%s6 + $0x9c] sm:$0xff]
  %v258 = vld [vmem:[%s6 + $0xa4] sm:$0xf]
  %v259 = vld [vmem:[%s6 + $0xa8] sm:$0xff]
  %v260 = vld [vmem:[%s6 + $0xb0] sm:$0xf]
  %v261 = vld [vmem:[%s6 + $0xb4] sm:$0xff]
  %v262 = vld [vmem:[%s6 + $0xbc] sm:$0xf]
  %v263 = vld [vmem:[%s7] sm:$0x7]
  %v264 = vld [vmem:[%s8] sm:$0xf]
  %v265 = vld [vmem:[%s8 + $0x4] sm:$0xf]
  %v266 = vld [vmem:[%s8 + $0x8] sm:$0xf]
  %v267 = vld [vmem:[%s8 + $0xc] sm:$0xf]
  %v268 = vld [vmem:[%s8 + $0x10] sm:$0xf]
  %v269 = vld [vmem:[%s8 + $0x14] sm:$0xf]
  %v270 = vld [vmem:[%s8 + $0x18] sm:$0xf]
  %v271 = vld [vmem:[%s8 + $0x1c] sm:$0xf]
  %v272 = vld [vmem:[%s8 + $0x20] sm:$0xf]
  %v273 = vld [vmem:[%s8 + $0x24] sm:$0xf]
  %v274 = vld [vmem:[%s8 + $0x28] sm:$0xf]
  %v275 = vld [vmem:[%s8 + $0x2c] sm:$0xf]
  %v276 = vld [vmem:[%s8 + $0x30] sm:$0xf]
  %v277 = vld [vmem:[%s8 + $0x34] sm:$0xf]
  %v278 = vld [vmem:[%s8 + $0x38] sm:$0xf]
  %v279 = vld [vmem:[%s8 + $0x3c] sm:$0xf]
  %v280 = vld [vmem:[%s9] sm:$0x1]
  %v281 = vld [vmem:[%s10] sm:$0x1]
  %v282 = vld [vmem:[%s11] sm:$0x1]
  %v283 = vld [vmem:[%s12] sm:$0xff]
  %v284 = vld [vmem:[%s12 + $0x8] sm:$0xff]
  %v285 = vld [vmem:[%s12 + $0x10] sm:$0xff]
  %v286 = vld [vmem:[%s12 + $0x18] sm:$0xff]
  %v287 = vld [vmem:[%s12 + $0x20] sm:$0xff]
  %v288 = vld [vmem:[%s12 + $0x28] sm:$0xff]
  %v289 = vld [vmem:[%s12 + $0x30] sm:$0xff]
  %v290 = vld [vmem:[%s12 + $0x38] sm:$0xff]
  %v291 = vld [vmem:[%s12 + $0x40] sm:$0xff]
  %v292 = vld [vmem:[%s12 + $0x48] sm:$0xff]
  %v293 = vld [vmem:[%s12 + $0x50] sm:$0xff]
  %v294 = vld [vmem:[%s12 + $0x58] sm:$0xff]
  %v295 = vld [vmem:[%s12 + $0x60] sm:$0xff]
  %v296 = vld [vmem:[%s12 + $0x68] sm:$0xff]
  %v297 = vld [vmem:[%s12 + $0x70] sm:$0xff]
  %v298 = vld [vmem:[%s12 + $0x78] sm:$0xff]
  %v299 = vld [vmem:[%s13] sm:$0x3]
  %v300 = vld [vmem:[%s14] sm:$0xf]
  %v301 = vld [vmem:[%s14 + $0x4] sm:$0xf]
  %v302 = vld [vmem:[%s14 + $0x8] sm:$0xf]
  %v303 = vld [vmem:[%s14 + $0xc] sm:$0xf]
  %v304 = vld [vmem:[%s14 + $0x10] sm:$0xf]
  %v305 = vld [vmem:[%s14 + $0x14] sm:$0xf]
  %v306 = vld [vmem:[%s14 + $0x18] sm:$0xf]
  %v307 = vld [vmem:[%s14 + $0x1c] sm:$0xf]
  %v308 = vld [vmem:[%s14 + $0x20] sm:$0xf]
  %v309 = vld [vmem:[%s14 + $0x24] sm:$0xf]
  %v310 = vld [vmem:[%s14 + $0x28] sm:$0xf]
  %v311 = vld [vmem:[%s14 + $0x2c] sm:$0xf]
  %v312 = vld [vmem:[%s14 + $0x30] sm:$0xf]
  %v313 = vld [vmem:[%s14 + $0x34] sm:$0xf]
  %v314 = vld [vmem:[%s14 + $0x38] sm:$0xf]
  %v315 = vld [vmem:[%s14 + $0x3c] sm:$0xf]
  %v316 = vld [vmem:[%s14 + $0x40] sm:$0xf]
  %v317 = vld [vmem:[%s14 + $0x44] sm:$0xf]
  %v318 = vld [vmem:[%s14 + $0x48] sm:$0xf]
  %v319 = vld [vmem:[%s14 + $0x4c] sm:$0xf]
  %v320 = vld [vmem:[%s14 + $0x50] sm:$0xf]
  %v321 = vld [vmem:[%s14 + $0x54] sm:$0xf]
  %v322 = vld [vmem:[%s14 + $0x58] sm:$0xf]
  %v323 = vld [vmem:[%s14 + $0x5c] sm:$0xf]
  %v324 = vld [vmem:[%s14 + $0x60] sm:$0xf]
  %v325 = vld [vmem:[%s14 + $0x64] sm:$0xf]
  %v326 = vld [vmem:[%s14 + $0x68] sm:$0xf]
  %v327 = vld [vmem:[%s14 + $0x6c] sm:$0xf]
  %v328 = vld [vmem:[%s14 + $0x70] sm:$0xf]
  %v329 = vld [vmem:[%s14 + $0x74] sm:$0xf]
  %v330 = vld [vmem:[%s14 + $0x78] sm:$0xf]
  %v331 = vld [vmem:[%s14 + $0x7c] sm:$0xf]
  %v332 = vld [vmem:[%s15] sm:$0x1]
  %v333 = vld [vmem:[%s16] sm:$0x1]
  %v334 = vld [vmem:[%s17] sm:$0x1]
  loop: start=0, step=1, limit=6
  $region90: #{timesformer_forward.1} parent=0 // loop_pre_header
    _
  $region91: #{timesformer_forward.1} parent=0 // loop_header
    %s336 = sphi 0, %s340
    %p337 = scmp.ge.s32.totalorder %s336, 6
    %v341 = vphi %v212, %v1295
    %v342 = vphi %v211, %v1296
    %v343 = vphi %v213, %v1297
    %v344 = vphi %v211, %v1298
  $region92: #{timesformer_forward.1} parent=0 // loop_header_branch
    %339 = sbr.rel (%p337) target = $region96
  $region93: #{timesformer_forward.1} parent=0 // loop_body
    %v345 = vpack.c.bf16 %v342, %v341
    %v346 = vpack.c.bf16 %v344, %v343
    %v348 = vperm.slane %v263, 0
    %v349 = vperm.slane %v263, 1
    %v350 = vperm.slane %v263, 2
    %v386 = vunpack.c.l.b16 %v231
    %v387 = vunpack.c.h.b16 %v231
    %v388 = vunpack.c.l.b16 %v232
    %v389 = vunpack.c.l.b16 %v233
    %v390 = vunpack.c.h.b16 %v233
    %v391 = vunpack.c.l.b16 %v234
    %v392 = vunpack.c.l.b16 %v235
    %v393 = vunpack.c.h.b16 %v235
    %v394 = vunpack.c.l.b16 %v236
    %v395 = vunpack.c.l.b16 %v237
    %v396 = vunpack.c.h.b16 %v237
    %v397 = vunpack.c.l.b16 %v238
    %v398 = vunpack.c.l.b16 %v239
    %v399 = vunpack.c.h.b16 %v239
    %v400 = vunpack.c.l.b16 %v240
    %v401 = vunpack.c.l.b16 %v241
    %v402 = vunpack.c.h.b16 %v241
    %v403 = vunpack.c.l.b16 %v242
    %v404 = vunpack.c.l.b16 %v243
    %v405 = vunpack.c.h.b16 %v243
    %v406 = vunpack.c.l.b16 %v244
    %v407 = vunpack.c.l.b16 %v245
    %v408 = vunpack.c.h.b16 %v245
    %v409 = vunpack.c.l.b16 %v246
    %v410 = vunpack.c.l.b16 %v247
    %v411 = vunpack.c.h.b16 %v247
    %v412 = vunpack.c.l.b16 %v248
    %v413 = vunpack.c.l.b16 %v249
    %v414 = vunpack.c.h.b16 %v249
    %v415 = vunpack.c.l.b16 %v250
    %v416 = vunpack.c.l.b16 %v251
    %v417 = vunpack.c.h.b16 %v251
    %v418 = vunpack.c.l.b16 %v252
    %v419 = vunpack.c.l.b16 %v253
    %v420 = vunpack.c.h.b16 %v253
    %v421 = vunpack.c.l.b16 %v254
    %v422 = vunpack.c.l.b16 %v255
    %v423 = vunpack.c.h.b16 %v255
    %v424 = vunpack.c.l.b16 %v256
    %v425 = vunpack.c.l.b16 %v257
    %v426 = vunpack.c.h.b16 %v257
    %v427 = vunpack.c.l.b16 %v258
    %v428 = vunpack.c.l.b16 %v259
    %v429 = vunpack.c.h.b16 %v259
    %v430 = vunpack.c.l.b16 %v260
    %v431 = vunpack.c.l.b16 %v261
    %v432 = vunpack.c.h.b16 %v261
    %v433 = vunpack.c.l.b16 %v262
    %v434 = vpack.c.b16 %v389, %v386
    %v435 = vpack.c.b16 %v390, %v387
    %v436 = vpack.c.b16 %v391, %v388
    %v437 = vpack.c.b16 %v395, %v392
    %v438 = vpack.c.b16 %v396, %v393
    %v439 = vpack.c.b16 %v397, %v394
    %v440 = vpack.c.b16 %v401, %v398
    %v441 = vpack.c.b16 %v402, %v399
    %v442 = vpack.c.b16 %v403, %v400
    %v443 = vpack.c.b16 %v407, %v404
    %v444 = vpack.c.b16 %v408, %v405
    %v445 = vpack.c.b16 %v409, %v406
    %v446 = vpack.c.b16 %v413, %v410
    %v447 = vpack.c.b16 %v414, %v411
    %v448 = vpack.c.b16 %v415, %v412
    %v449 = vpack.c.b16 %v419, %v416
    %v450 = vpack.c.b16 %v420, %v417
    %v451 = vpack.c.b16 %v421, %v418
    %v452 = vpack.c.b16 %v425, %v422
    %v453 = vpack.c.b16 %v426, %v423
    %v454 = vpack.c.b16 %v427, %v424
    %v455 = vpack.c.b16 %v431, %v428
    %v456 = vpack.c.b16 %v432, %v429
    %v457 = vpack.c.b16 %v433, %v430
    %482 = vmatpush.bf16.msra.mxu0 %v455
    %483 = vmatpush.bf16.msra.mxu0 %v452
    %484 = vmatpush.bf16.msra.mxu0 %v449
    %485 = vmatpush.bf16.msra.mxu0 %v446
    %486 = vmatpush.bf16.msra.mxu0 %v443
    %487 = vmatpush.bf16.msra.mxu0 %v440
    %488 = vmatpush.bf16.msra.mxu0 %v437
    %489 = vmatpush.bf16.msra.mxu0 %v434
    %490 = vmatmul.bf16.gmra.mxu0 %v345
    %v491 = vpop.f32.mrf.mxu0
    %v492 = vadd.f32 %v348, %v491
    %v493 = vpop.f32.mrf.mxu0
    %v494 = vadd.f32 %v348, %v493
    %495 = vmatmul.bf16.gmra.mxu0 %v346
    %v496 = vpop.f32.mrf.mxu0
    %v497 = vadd.f32 %v348, %v496
    %v498 = vpop.f32.mrf.mxu0
    %v499 = vadd.f32 %v348, %v498
    %500 = vdwg.mxu0
    %501 = vmatpush.bf16.msra.mxu0 %v456
    %502 = vmatpush.bf16.msra.mxu0 %v453
    %503 = vmatpush.bf16.msra.mxu0 %v450
    %504 = vmatpush.bf16.msra.mxu0 %v447
    %505 = vmatpush.bf16.msra.mxu0 %v444
    %506 = vmatpush.bf16.msra.mxu0 %v441
    %507 = vmatpush.bf16.msra.mxu0 %v438
    %508 = vmatpush.bf16.msra.mxu0 %v435
    %509 = vmatmul.bf16.gmra.mxu0 %v345
    %v510 = vpop.f32.mrf.mxu0
    %v511 = vadd.f32 %v349, %v510
    %v512 = vpop.f32.mrf.mxu0
    %v513 = vadd.f32 %v349, %v512
    %514 = vmatmul.bf16.gmra.mxu0 %v346
    %v515 = vpop.f32.mrf.mxu0
    %v516 = vadd.f32 %v349, %v515
    %v517 = vpop.f32.mrf.mxu0
    %v518 = vadd.f32 %v349, %v517
    %519 = vdwg.mxu0
    %520 = vmatpush.bf16.msra.mxu0 %v457
    %521 = vmatpush.bf16.msra.mxu0 %v454
    %522 = vmatpush.bf16.msra.mxu0 %v451
    %523 = vmatpush.bf16.msra.mxu0 %v448
    %524 = vmatpush.bf16.msra.mxu0 %v445
    %525 = vmatpush.bf16.msra.mxu0 %v442
    %526 = vmatpush.bf16.msra.mxu0 %v439
    %527 = vmatpush.bf16.msra.mxu0 %v436
    %528 = vmatmul.bf16.gmra.mxu0 %v345
    %v529 = vpop.f32.mrf.mxu0
    %v530 = vadd.f32 %v350, %v529
    %v531 = vpop.f32.mrf.mxu0
    %v532 = vadd.f32 %v350, %v531
    %533 = vmatmul.bf16.gmra.mxu0 %v346
    %v534 = vpop.f32.mrf.mxu0
    %v535 = vadd.f32 %v350, %v534
    %v536 = vpop.f32.mrf.mxu0
    %v537 = vadd.f32 %v350, %v536
    %538 = vdwg.mxu0
    %v539 = vmul.f32 %v492, %v511
    %v540 = vmul.f32 %v494, %v513
    %v541 = vmul.f32 %v497, %v516
    %v542 = vmul.f32 %v499, %v518
    %v543 = vmul.f32 %v492, %v516
    %v544 = vmul.f32 %v494, %v518
    %v545 = vmul.f32 %v497, %v511
    %v546 = vmul.f32 %v499, %v513
    %v547 = vpack.c.bf16 %v540, %v539
    %v548 = vpack.c.bf16 %v542, %v541
    %v549 = vpack.c.bf16 %v544, %v543
    %v550 = vpack.c.bf16 %v546, %v545
    %v567 = vunpack.c.l.b16 %v214
    %v568 = vunpack.c.l.b16 %v215
    %v569 = vunpack.c.l.b16 %v216
    %v570 = vunpack.c.l.b16 %v217
    %v571 = vunpack.c.l.b16 %v218
    %v572 = vunpack.c.l.b16 %v219
    %v573 = vunpack.c.l.b16 %v220
    %v574 = vunpack.c.l.b16 %v221
    %v575 = vunpack.c.l.b16 %v222
    %v576 = vunpack.c.l.b16 %v223
    %v577 = vunpack.c.l.b16 %v224
    %v578 = vunpack.c.l.b16 %v225
    %v579 = vunpack.c.l.b16 %v226
    %v580 = vunpack.c.l.b16 %v227
    %v581 = vunpack.c.l.b16 %v228
    %v582 = vunpack.c.l.b16 %v229
    %v583 = vpack.c.b16 %v568, %v567
    %v584 = vpack.c.b16 %v570, %v569
    %v585 = vpack.c.b16 %v572, %v571
    %v586 = vpack.c.b16 %v574, %v573
    %v587 = vpack.c.b16 %v576, %v575
    %v588 = vpack.c.b16 %v578, %v577
    %v589 = vpack.c.b16 %v580, %v579
    %v590 = vpack.c.b16 %v582, %v581
    %599 = vmatpush.bf16.msra.mxu0 %v590
    %600 = vmatpush.bf16.msra.mxu0 %v589
    %601 = vmatpush.bf16.msra.mxu0 %v588
    %602 = vmatpush.bf16.msra.mxu0 %v587
    %603 = vmatpush.bf16.msra.mxu0 %v586
    %604 = vmatpush.bf16.msra.mxu0 %v585
    %605 = vmatpush.bf16.msra.mxu0 %v584
    %606 = vmatpush.bf16.msra.mxu0 %v583
    %607 = vmatmul.bf16.gmra.mxu0 %v547
    %v608 = vpop.f32.mrf.mxu0
    %v609 = vadd.f32 0.0, %v608
    %v610 = vpop.f32.mrf.mxu0
    %v611 = vadd.f32 0.0, %v610
    %612 = vmatmul.bf16.gmra.mxu0 %v548
    %v613 = vpop.f32.mrf.mxu0
    %v614 = vadd.f32 0.0, %v613
    %v615 = vpop.f32.mrf.mxu0
    %v616 = vadd.f32 0.0, %v615
    %617 = vmatmul.bf16.gmra.mxu0 %v549
    %v618 = vpop.f32.mrf.mxu0
    %v619 = vadd.f32 0.0, %v618
    %v620 = vpop.f32.mrf.mxu0
    %v621 = vadd.f32 0.0, %v620
    %622 = vmatmul.bf16.gmra.mxu0 %v550
    %v623 = vpop.f32.mrf.mxu0
    %v624 = vadd.f32 0.0, %v623
    %v625 = vpop.f32.mrf.mxu0
    %v626 = vadd.f32 0.0, %v625
    %627 = vdwg.mxu0
    %v628 = vmul.f32 %v609, 0.17677669
    %v629 = vmul.f32 %v611, 0.17677669
    %v630 = vmul.f32 %v614, 0.17677669
    %v631 = vmul.f32 %v616, 0.17677669
    %v632 = vmul.f32 %v619, 0.17677669
    %v633 = vmul.f32 %v621, 0.17677669
    %v634 = vmul.f32 %v624, 0.17677669
    %v635 = vmul.f32 %v626, 0.17677669
    %v636 = vmax.f32 %v628, %v632
    %v637 = vmax.f32 %v629, %v633
    %v638 = vmax.f32 %v630, %v634
    %v639 = vmax.f32 %v631, %v635
    %v640 = vsub.f32 %v628, %v636
    %v641 = vsub.f32 %v629, %v637
    %v642 = vsub.f32 %v630, %v638
    %v643 = vsub.f32 %v631, %v639
    %v644 = vmul.f32 %v640, 1.442695
    %v645 = vpow.pop %v644
    %v646 = vmul.f32 %v641, 1.442695
    %v647 = vpow.pop %v646
    %v648 = vmul.f32 %v642, 1.442695
    %v649 = vpow.pop %v648
    %v650 = vmul.f32 %v643, 1.442695
    %v651 = vpow.pop %v650
    %v652 = vsub.f32 %v632, %v636
    %v653 = vsub.f32 %v633, %v637
    %v654 = vsub.f32 %v634, %v638
    %v655 = vsub.f32 %v635, %v639
    %v656 = vmul.f32 %v652, 1.442695
    %v657 = vpow.pop %v656
    %v658 = vmul.f32 %v653, 1.442695
    %v659 = vpow.pop %v658
    %v660 = vmul.f32 %v654, 1.442695
    %v661 = vpow.pop %v660
    %v662 = vmul.f32 %v655, 1.442695
    %v663 = vpow.pop %v662
    %v664 = vadd.f32 %v645, %v657
    %v665 = vadd.f32 %v647, %v659
    %v666 = vadd.f32 %v649, %v661
    %v667 = vadd.f32 %v651, %v663
    %v668 = vrcp.pop %v664
    %v669 = vrcp.pop %v665
    %v670 = vrcp.pop %v666
    %v671 = vrcp.pop %v667
    %v672 = vmul.f32 %v645, %v668
    %v673 = vmul.f32 %v647, %v669
    %v674 = vmul.f32 %v649, %v670
    %v675 = vmul.f32 %v651, %v671
    %v676 = vmul.f32 %v657, %v668
    %v677 = vmul.f32 %v659, %v669
    %v678 = vmul.f32 %v661, %v670
    %v679 = vmul.f32 %v663, %v671
    %v680 = vpack.c.bf16 %v673, %v672
    %v681 = vpack.c.bf16 %v675, %v674
    %v682 = vpack.c.bf16 %v677, %v676
    %v683 = vpack.c.bf16 %v679, %v678
    %vm684 = vcmask 31744
    %v686 = vsel %vm684, %v680, 0
    %v689 = vsel %vm684, %v681, 0
    %v692 = vsel %vm684, %v682, 0
    %v695 = vsel %vm684, %v683, 0
    %vm697 = vcmask 1041408
    %v699 = vsel %vm697, %v230, 0
    %701 = vmatpush.bf16.msra.mxu0 0
    %702 = vmatpush.bf16.msra.mxu0 0
    %703 = vmatpush.bf16.msra.mxu0 0
    %704 = vmatpush.bf16.msra.mxu0 0
    %705 = vmatpush.bf16.msra.mxu0 0
    %706 = vmatpush.bf16.msra.mxu0 0
    %707 = vmatpush.bf16.msra.mxu0 0
    %708 = vmatpush.bf16.msra.mxu0 %v699
    %709 = vmatmul.bf16.gmra.mxu0 %v686
    %v710 = vpop.f32.mrf.mxu0
    %v711 = vadd.f32 0.0, %v710
    %v712 = vpop.f32.mrf.mxu0
    %v713 = vadd.f32 0.0, %v712
    %714 = vmatmul.bf16.gmra.mxu0 %v689
    %v715 = vpop.f32.mrf.mxu0
    %v716 = vadd.f32 0.0, %v715
    %v717 = vpop.f32.mrf.mxu0
    %v718 = vadd.f32 0.0, %v717
    %719 = vmatmul.bf16.gmra.mxu0 %v692
    %v720 = vpop.f32.mrf.mxu0
    %v721 = vadd.f32 0.0, %v720
    %v722 = vpop.f32.mrf.mxu0
    %v723 = vadd.f32 0.0, %v722
    %724 = vmatmul.bf16.gmra.mxu0 %v695
    %v725 = vpop.f32.mrf.mxu0
    %v726 = vadd.f32 0.0, %v725
    %v727 = vpop.f32.mrf.mxu0
    %v728 = vadd.f32 0.0, %v727
    %729 = vdwg.mxu0
    %v730 = vmul.f32 %v711, %v530
    %v731 = vmul.f32 %v713, %v532
    %v732 = vmul.f32 %v716, %v535
    %v733 = vmul.f32 %v718, %v537
    %v734 = vmul.f32 %v721, %v535
    %v735 = vmul.f32 %v723, %v537
    %v736 = vmul.f32 %v726, %v530
    %v737 = vmul.f32 %v728, %v532
    %v738 = vadd.f32 %v730, %v734
    %v739 = vadd.f32 %v731, %v735
    %v740 = vadd.f32 %v732, %v736
    %v741 = vadd.f32 %v733, %v737
    %v742 = vpack.c.bf16 %v739, %v738
    %v743 = vpack.c.bf16 %v741, %v740
    %v760 = vunpack.c.l.b16 %v264
    %v761 = vunpack.c.l.b16 %v265
    %v762 = vunpack.c.l.b16 %v266
    %v763 = vunpack.c.l.b16 %v267
    %v764 = vunpack.c.l.b16 %v268
    %v765 = vunpack.c.l.b16 %v269
    %v766 = vunpack.c.l.b16 %v270
    %v767 = vunpack.c.l.b16 %v271
    %v768 = vunpack.c.l.b16 %v272
    %v769 = vunpack.c.l.b16 %v273
    %v770 = vunpack.c.l.b16 %v274
    %v771 = vunpack.c.l.b16 %v275
    %v772 = vunpack.c.l.b16 %v276
    %v773 = vunpack.c.l.b16 %v277
    %v774 = vunpack.c.l.b16 %v278
    %v775 = vunpack.c.l.b16 %v279
    %v776 = vpack.c.b16 %v761, %v760
    %v777 = vpack.c.b16 %v763, %v762
    %v778 = vpack.c.b16 %v765, %v764
    %v779 = vpack.c.b16 %v767, %v766
    %v780 = vpack.c.b16 %v769, %v768
    %v781 = vpack.c.b16 %v771, %v770
    %v782 = vpack.c.b16 %v773, %v772
    %v783 = vpack.c.b16 %v775, %v774
    %792 = vmatpush.bf16.msra.mxu0 %v783
    %793 = vmatpush.bf16.msra.mxu0 %v782
    %794 = vmatpush.bf16.msra.mxu0 %v781
    %795 = vmatpush.bf16.msra.mxu0 %v780
    %796 = vmatpush.bf16.msra.mxu0 %v779
    %797 = vmatpush.bf16.msra.mxu0 %v778
    %798 = vmatpush.bf16.msra.mxu0 %v777
    %799 = vmatpush.bf16.msra.mxu0 %v776
    %800 = vmatmul.bf16.gmra.mxu0 %v742
    %v801 = vpop.f32.mrf.mxu0
    %v802 = vadd.f32 0.0, %v801
    %v803 = vpop.f32.mrf.mxu0
    %v804 = vadd.f32 0.0, %v803
    %805 = vmatmul.bf16.gmra.mxu0 %v743
    %v806 = vpop.f32.mrf.mxu0
    %v807 = vadd.f32 0.0, %v806
    %v808 = vpop.f32.mrf.mxu0
    %v809 = vadd.f32 0.0, %v808
    %810 = vdwg.mxu0
    %v811 = vadd.f32 %v341, %v802
    %v812 = vadd.f32 %v342, %v804
    %v813 = vadd.f32 %v343, %v807
    %v814 = vadd.f32 %v344, %v809
    %v816 = vperm.slane %v280, 0
    %v818 = vadd.f32 %v811, %v816
    %v819 = vadd.f32 %v812, %v816
    %v820 = vadd.f32 %v813, %v816
    %v821 = vadd.f32 %v814, %v816
    %822 = vadd.xlane.f32.xlu0 %v818
    %v823 = vpop.xlane.xlu0 %822
    %824 = vadd.xlane.f32.xlu0 %v819
    %v825 = vpop.xlane.xlu0 %824
    %826 = vadd.xlane.f32.xlu0 %v820
    %v827 = vpop.xlane.xlu0 %826
    %828 = vadd.xlane.f32.xlu0 %v821
    %v829 = vpop.xlane.xlu0 %828
    %v830 = vrcp.pop 128.0
    %v831 = vmul.f32 128.0, %v830
    %v832 = vsub.f32 1.0, %v831
    %v833 = vmul.f32 %v830, %v832
    %v834 = vadd.f32 %v830, %v833
    %vm835 = vweird.f32 %v830
    %v836 = vsel %vm835, %v830, %v834
    %v837 = vmul.f32 %v823, %v836
    %v838 = vmul.f32 %v825, %v836
    %v839 = vmul.f32 %v827, %v836
    %v840 = vmul.f32 %v829, %v836
    %v841 = vsub.f32 %v818, %v837
    %v842 = vsub.f32 %v819, %v838
    %v843 = vsub.f32 %v820, %v839
    %v844 = vsub.f32 %v821, %v840
    %v845 = vmul.f32 %v841, %v841
    %v846 = vmul.f32 %v842, %v842
    %v847 = vmul.f32 %v843, %v843
    %v848 = vmul.f32 %v844, %v844
    %849 = vadd.xlane.f32.xlu0 %v845
    %v850 = vpop.xlane.xlu0 %849
    %851 = vadd.xlane.f32.xlu0 %v846
    %v852 = vpop.xlane.xlu0 %851
    %853 = vadd.xlane.f32.xlu0 %v847
    %v854 = vpop.xlane.xlu0 %853
    %855 = vadd.xlane.f32.xlu0 %v848
    %v856 = vpop.xlane.xlu0 %855
    %v857 = vmul.f32 %v850, %v836
    %v858 = vmul.f32 %v852, %v836
    %v859 = vmul.f32 %v854, %v836
    %v860 = vmul.f32 %v856, %v836
    %v861 = vadd.f32 %v857, 1e-05
    %v862 = vadd.f32 %v858, 1e-05
    %v863 = vadd.f32 %v859, 1e-05
    %v864 = vadd.f32 %v860, 1e-05
    %v865 = vrsqrt.pop %v861
    %v866 = vmul.f32 %v865, %v861
    %v867 = vmul.f32 %v866, %v865
    %v868 = vmul.f32 0.5, %v867
    %v869 = vsub.f32 1.5, %v868
    %v870 = vmul.f32 %v865, %v869
    %vm871 = vweird.f32 %v861
    %vm872 = vweird.f32 %v865
    %vm873 = vmor %vm871, %vm872
    %v874 = vsel %vm873, %v865, %v870
    %v875 = vrsqrt.pop %v862
    %v876 = vmul.f32 %v875, %v862
    %v877 = vmul.f32 %v876, %v875
    %v878 = vmul.f32 0.5, %v877
    %v879 = vsub.f32 1.5, %v878
    %v880 = vmul.f32 %v875, %v879
    %vm881 = vweird.f32 %v862
    %vm882 = vweird.f32 %v875
    %vm883 = vmor %vm881, %vm882
    %v884 = vsel %vm883, %v875, %v880
    %v885 = vrsqrt.pop %v863
    %v886 = vmul.f32 %v885, %v863
    %v887 = vmul.f32 %v886, %v885
    %v888 = vmul.f32 0.5, %v887
    %v889 = vsub.f32 1.5, %v888
    %v890 = vmul.f32 %v885, %v889
    %vm891 = vweird.f32 %v863
    %vm892 = vweird.f32 %v885
    %vm893 = vmor %vm891, %vm892
    %v894 = vsel %vm893, %v885, %v890
    %v895 = vrsqrt.pop %v864
    %v896 = vmul.f32 %v895, %v864
    %v897 = vmul.f32 %v896, %v895
    %v898 = vmul.f32 0.5, %v897
    %v899 = vsub.f32 1.5, %v898
    %v900 = vmul.f32 %v895, %v899
    %vm901 = vweird.f32 %v864
    %vm902 = vweird.f32 %v895
    %vm903 = vmor %vm901, %vm902
    %v904 = vsel %vm903, %v895, %v900
    %v905 = vmul.f32 %v841, %v874
    %v906 = vmul.f32 %v842, %v884
    %v907 = vmul.f32 %v843, %v894
    %v908 = vmul.f32 %v844, %v904
    %v910 = vperm.slane %v281, 0
    %v912 = vmul.f32 %v905, %v910
    %v913 = vmul.f32 %v906, %v910
    %v914 = vmul.f32 %v907, %v910
    %v915 = vmul.f32 %v908, %v910
    %v917 = vperm.slane %v282, 0
    %v919 = vadd.f32 %v912, %v917
    %v920 = vadd.f32 %v913, %v917
    %v921 = vadd.f32 %v914, %v917
    %v922 = vadd.f32 %v915, %v917
    %v923 = vpack.c.bf16 %v920, %v919
    %v924 = vpack.c.bf16 %v922, %v921
    %v926 = vperm.slane %v299, 0
    %v927 = vperm.slane %v299, 1
    %v946 = vunpack.c.l.b16 %v283
    %v947 = vunpack.c.h.b16 %v283
    %v948 = vunpack.c.l.b16 %v284
    %v949 = vunpack.c.h.b16 %v284
    %v950 = vunpack.c.l.b16 %v285
    %v951 = vunpack.c.h.b16 %v285
    %v952 = vunpack.c.l.b16 %v286
    %v953 = vunpack.c.h.b16 %v286
    %v954 = vunpack.c.l.b16 %v287
    %v955 = vunpack.c.h.b16 %v287
    %v956 = vunpack.c.l.b16 %v288
    %v957 = vunpack.c.h.b16 %v288
    %v958 = vunpack.c.l.b16 %v289
    %v959 = vunpack.c.h.b16 %v289
    %v960 = vunpack.c.l.b16 %v290
    %v961 = vunpack.c.h.b16 %v290
    %v962 = vunpack.c.l.b16 %v291
    %v963 = vunpack.c.h.b16 %v291
    %v964 = vunpack.c.l.b16 %v292
    %v965 = vunpack.c.h.b16 %v292
    %v966 = vunpack.c.l.b16 %v293
    %v967 = vunpack.c.h.b16 %v293
    %v968 = vunpack.c.l.b16 %v294
    %v969 = vunpack.c.h.b16 %v294
    %v970 = vunpack.c.l.b16 %v295
    %v971 = vunpack.c.h.b16 %v295
    %v972 = vunpack.c.l.b16 %v296
    %v973 = vunpack.c.h.b16 %v296
    %v974 = vunpack.c.l.b16 %v297
    %v975 = vunpack.c.h.b16 %v297
    %v976 = vunpack.c.l.b16 %v298
    %v977 = vunpack.c.h.b16 %v298
    %v978 = vpack.c.b16 %v948, %v946
    %v979 = vpack.c.b16 %v949, %v947
    %v980 = vpack.c.b16 %v952, %v950
    %v981 = vpack.c.b16 %v953, %v951
    %v982 = vpack.c.b16 %v956, %v954
    %v983 = vpack.c.b16 %v957, %v955
    %v984 = vpack.c.b16 %v960, %v958
    %v985 = vpack.c.b16 %v961, %v959
    %v986 = vpack.c.b16 %v964, %v962
    %v987 = vpack.c.b16 %v965, %v963
    %v988 = vpack.c.b16 %v968, %v966
    %v989 = vpack.c.b16 %v969, %v967
    %v990 = vpack.c.b16 %v972, %v970
    %v991 = vpack.c.b16 %v973, %v971
    %v992 = vpack.c.b16 %v976, %v974
    %v993 = vpack.c.b16 %v977, %v975
    %1010 = vmatpush.bf16.msra.mxu0 %v992
    %1011 = vmatpush.bf16.msra.mxu0 %v990
    %1012 = vmatpush.bf16.msra.mxu0 %v988
    %1013 = vmatpush.bf16.msra.mxu0 %v986
    %1014 = vmatpush.bf16.msra.mxu0 %v984
    %1015 = vmatpush.bf16.msra.mxu0 %v982
    %1016 = vmatpush.bf16.msra.mxu0 %v980
    %1017 = vmatpush.bf16.msra.mxu0 %v978
    %1018 = vmatmul.bf16.gmra.mxu0 %v923
    %v1019 = vpop.f32.mrf.mxu0
    %v1020 = vadd.f32 %v926, %v1019
    %v1021 = vpop.f32.mrf.mxu0
    %v1022 = vadd.f32 %v926, %v1021
    %1023 = vmatmul.bf16.gmra.mxu0 %v924
    %v1024 = vpop.f32.mrf.mxu0
    %v1025 = vadd.f32 %v926, %v1024
    %v1026 = vpop.f32.mrf.mxu0
    %v1027 = vadd.f32 %v926, %v1026
    %1028 = vdwg.mxu0
    %1029 = vmatpush.bf16.msra.mxu0 %v993
    %1030 = vmatpush.bf16.msra.mxu0 %v991
    %1031 = vmatpush.bf16.msra.mxu0 %v989
    %1032 = vmatpush.bf16.msra.mxu0 %v987
    %1033 = vmatpush.bf16.msra.mxu0 %v985
    %1034 = vmatpush.bf16.msra.mxu0 %v983
    %1035 = vmatpush.bf16.msra.mxu0 %v981
    %1036 = vmatpush.bf16.msra.mxu0 %v979
    %1037 = vmatmul.bf16.gmra.mxu0 %v923
    %v1038 = vpop.f32.mrf.mxu0
    %v1039 = vadd.f32 %v927, %v1038
    %v1040 = vpop.f32.mrf.mxu0
    %v1041 = vadd.f32 %v927, %v1040
    %1042 = vmatmul.bf16.gmra.mxu0 %v924
    %v1043 = vpop.f32.mrf.mxu0
    %v1044 = vadd.f32 %v927, %v1043
    %v1045 = vpop.f32.mrf.mxu0
    %v1046 = vadd.f32 %v927, %v1045
    %1047 = vdwg.mxu0
    %v1048 = vmax.f32 %v1020, 0.0
    %v1049 = vmax.f32 %v1039, 0.0
    %v1050 = vmax.f32 %v1022, 0.0
    %v1051 = vmax.f32 %v1041, 0.0
    %v1052 = vmax.f32 %v1025, 0.0
    %v1053 = vmax.f32 %v1044, 0.0
    %v1054 = vmax.f32 %v1027, 0.0
    %v1055 = vmax.f32 %v1046, 0.0
    %v1056 = vpack.c.bf16 %v1050, %v1048
    %v1057 = vpack.c.bf16 %v1051, %v1049
    %v1058 = vpack.c.bf16 %v1054, %v1052
    %v1059 = vpack.c.bf16 %v1055, %v1053
    %v1092 = vunpack.c.l.b16 %v300
    %v1093 = vunpack.c.l.b16 %v301
    %v1094 = vunpack.c.l.b16 %v302
    %v1095 = vunpack.c.l.b16 %v303
    %v1096 = vunpack.c.l.b16 %v304
    %v1097 = vunpack.c.l.b16 %v305
    %v1098 = vunpack.c.l.b16 %v306
    %v1099 = vunpack.c.l.b16 %v307
    %v1100 = vunpack.c.l.b16 %v308
    %v1101 = vunpack.c.l.b16 %v309
    %v1102 = vunpack.c.l.b16 %v310
    %v1103 = vunpack.c.l.b16 %v311
    %v1104 = vunpack.c.l.b16 %v312
    %v1105 = vunpack.c.l.b16 %v313
    %v1106 = vunpack.c.l.b16 %v314
    %v1107 = vunpack.c.l.b16 %v315
    %v1108 = vunpack.c.l.b16 %v316
    %v1109 = vunpack.c.l.b16 %v317
    %v1110 = vunpack.c.l.b16 %v318
    %v1111 = vunpack.c.l.b16 %v319
    %v1112 = vunpack.c.l.b16 %v320
    %v1113 = vunpack.c.l.b16 %v321
    %v1114 = vunpack.c.l.b16 %v322
    %v1115 = vunpack.c.l.b16 %v323
    %v1116 = vunpack.c.l.b16 %v324
    %v1117 = vunpack.c.l.b16 %v325
    %v1118 = vunpack.c.l.b16 %v326
    %v1119 = vunpack.c.l.b16 %v327
    %v1120 = vunpack.c.l.b16 %v328
    %v1121 = vunpack.c.l.b16 %v329
    %v1122 = vunpack.c.l.b16 %v330
    %v1123 = vunpack.c.l.b16 %v331
    %v1124 = vpack.c.b16 %v1093, %v1092
    %v1125 = vpack.c.b16 %v1095, %v1094
    %v1126 = vpack.c.b16 %v1097, %v1096
    %v1127 = vpack.c.b16 %v1099, %v1098
    %v1128 = vpack.c.b16 %v1101, %v1100
    %v1129 = vpack.c.b16 %v1103, %v1102
    %v1130 = vpack.c.b16 %v1105, %v1104
    %v1131 = vpack.c.b16 %v1107, %v1106
    %v1132 = vpack.c.b16 %v1109, %v1108
    %v1133 = vpack.c.b16 %v1111, %v1110
    %v1134 = vpack.c.b16 %v1113, %v1112
    %v1135 = vpack.c.b16 %v1115, %v1114
    %v1136 = vpack.c.b16 %v1117, %v1116
    %v1137 = vpack.c.b16 %v1119, %v1118
    %v1138 = vpack.c.b16 %v1121, %v1120
    %v1139 = vpack.c.b16 %v1123, %v1122
    %1156 = vmatpush.bf16.msra.mxu0 %v1131
    %1157 = vmatpush.bf16.msra.mxu0 %v1130
    %1158 = vmatpush.bf16.msra.mxu0 %v1129
    %1159 = vmatpush.bf16.msra.mxu0 %v1128
    %1160 = vmatpush.bf16.msra.mxu0 %v1127
    %1161 = vmatpush.bf16.msra.mxu0 %v1126
    %1162 = vmatpush.bf16.msra.mxu0 %v1125
    %1163 = vmatpush.bf16.msra.mxu0 %v1124
    %1164 = vmatmul.bf16.gmra.mxu0 %v1056
    %v1165 = vpop.f32.mrf.mxu0
    %v1166 = vadd.f32 0.0, %v1165
    %v1167 = vpop.f32.mrf.mxu0
    %v1168 = vadd.f32 0.0, %v1167
    %1169 = vmatmul.bf16.gmra.mxu0 %v1058
    %v1170 = vpop.f32.mrf.mxu0
    %v1171 = vadd.f32 0.0, %v1170
    %v1172 = vpop.f32.mrf.mxu0
    %v1173 = vadd.f32 0.0, %v1172
    %1174 = vdwg.mxu0
    %1175 = vmatpush.bf16.msra.mxu0 %v1139
    %1176 = vmatpush.bf16.msra.mxu0 %v1138
    %1177 = vmatpush.bf16.msra.mxu0 %v1137
    %1178 = vmatpush.bf16.msra.mxu0 %v1136
    %1179 = vmatpush.bf16.msra.mxu0 %v1135
    %1180 = vmatpush.bf16.msra.mxu0 %v1134
    %1181 = vmatpush.bf16.msra.mxu0 %v1133
    %1182 = vmatpush.bf16.msra.mxu0 %v1132
    %1183 = vmatmul.bf16.gmra.mxu0 %v1057
    %v1184 = vpop.f32.mrf.mxu0
    %v1185 = vadd.f32 %v1166, %v1184
    %v1186 = vpop.f32.mrf.mxu0
    %v1187 = vadd.f32 %v1168, %v1186
    %1188 = vmatmul.bf16.gmra.mxu0 %v1059
    %v1189 = vpop.f32.mrf.mxu0
    %v1190 = vadd.f32 %v1171, %v1189
    %v1191 = vpop.f32.mrf.mxu0
    %v1192 = vadd.f32 %v1173, %v1191
    %1193 = vdwg.mxu0
    %v1194 = vadd.f32 %v919, %v1185
    %v1195 = vadd.f32 %v920, %v1187
    %v1196 = vadd.f32 %v921, %v1190
    %v1197 = vadd.f32 %v922, %v1192
    %v1199 = vperm.slane %v332, 0
    %v1201 = vadd.f32 %v1194, %v1199
    %v1202 = vadd.f32 %v1195, %v1199
    %v1203 = vadd.f32 %v1196, %v1199
    %v1204 = vadd.f32 %v1197, %v1199
    %1205 = vadd.xlane.f32.xlu0 %v1201
    %v1206 = vpop.xlane.xlu0 %1205
    %1207 = vadd.xlane.f32.xlu0 %v1202
    %v1208 = vpop.xlane.xlu0 %1207
    %1209 = vadd.xlane.f32.xlu0 %v1203
    %v1210 = vpop.xlane.xlu0 %1209
    %1211 = vadd.xlane.f32.xlu0 %v1204
    %v1212 = vpop.xlane.xlu0 %1211
    %v1213 = vmul.f32 %v1206, %v836
    %v1214 = vmul.f32 %v1208, %v836
    %v1215 = vmul.f32 %v1210, %v836
    %v1216 = vmul.f32 %v1212, %v836
    %v1217 = vsub.f32 %v1201, %v1213
    %v1218 = vsub.f32 %v1202, %v1214
    %v1219 = vsub.f32 %v1203, %v1215
    %v1220 = vsub.f32 %v1204, %v1216
    %v1221 = vmul.f32 %v1217, %v1217
    %v1222 = vmul.f32 %v1218, %v1218
    %v1223 = vmul.f32 %v1219, %v1219
    %v1224 = vmul.f32 %v1220, %v1220
    %1225 = vadd.xlane.f32.xlu0 %v1221
    %v1226 = vpop.xlane.xlu0 %1225
    %1227 = vadd.xlane.f32.xlu0 %v1222
    %v1228 = vpop.xlane.xlu0 %1227
    %1229 = vadd.xlane.f32.xlu0 %v1223
    %v1230 = vpop.xlane.xlu0 %1229
    %1231 = vadd.xlane.f32.xlu0 %v1224
    %v1232 = vpop.xlane.xlu0 %1231
    %v1233 = vmul.f32 %v1226, %v836
    %v1234 = vmul.f32 %v1228, %v836
    %v1235 = vmul.f32 %v1230, %v836
    %v1236 = vmul.f32 %v1232, %v836
    %v1237 = vadd.f32 %v1233, 1e-05
    %v1238 = vadd.f32 %v1234, 1e-05
    %v1239 = vadd.f32 %v1235, 1e-05
    %v1240 = vadd.f32 %v1236, 1e-05
    %v1241 = vrsqrt.pop %v1237
    %v1242 = vmul.f32 %v1241, %v1237
    %v1243 = vmul.f32 %v1242, %v1241
    %v1244 = vmul.f32 0.5, %v1243
    %v1245 = vsub.f32 1.5, %v1244
    %v1246 = vmul.f32 %v1241, %v1245
    %vm1247 = vweird.f32 %v1237
    %vm1248 = vweird.f32 %v1241
    %vm1249 = vmor %vm1247, %vm1248
    %v1250 = vsel %vm1249, %v1241, %v1246
    %v1251 = vrsqrt.pop %v1238
    %v1252 = vmul.f32 %v1251, %v1238
    %v1253 = vmul.f32 %v1252, %v1251
    %v1254 = vmul.f32 0.5, %v1253
    %v1255 = vsub.f32 1.5, %v1254
    %v1256 = vmul.f32 %v1251, %v1255
    %vm1257 = vweird.f32 %v1238
    %vm1258 = vweird.f32 %v1251
    %vm1259 = vmor %vm1257, %vm1258
    %v1260 = vsel %vm1259, %v1251, %v1256
    %v1261 = vrsqrt.pop %v1239
    %v1262 = vmul.f32 %v1261, %v1239
    %v1263 = vmul.f32 %v1262, %v1261
    %v1264 = vmul.f32 0.5, %v1263
    %v1265 = vsub.f32 1.5, %v1264
    %v1266 = vmul.f32 %v1261, %v1265
    %vm1267 = vweird.f32 %v1239
    %vm1268 = vweird.f32 %v1261
    %vm1269 = vmor %vm1267, %vm1268
    %v1270 = vsel %vm1269, %v1261, %v1266
    %v1271 = vrsqrt.pop %v1240
    %v1272 = vmul.f32 %v1271, %v1240
    %v1273 = vmul.f32 %v1272, %v1271
    %v1274 = vmul.f32 0.5, %v1273
    %v1275 = vsub.f32 1.5, %v1274
    %v1276 = vmul.f32 %v1271, %v1275
    %vm1277 = vweird.f32 %v1240
    %vm1278 = vweird.f32 %v1271
    %vm1279 = vmor %vm1277, %vm1278
    %v1280 = vsel %vm1279, %v1271, %v1276
    %v1281 = vmul.f32 %v1217, %v1250
    %v1282 = vmul.f32 %v1218, %v1260
    %v1283 = vmul.f32 %v1219, %v1270
    %v1284 = vmul.f32 %v1220, %v1280
    %v1286 = vperm.slane %v333, 0
    %v1288 = vmul.f32 %v1281, %v1286
    %v1289 = vmul.f32 %v1282, %v1286
    %v1290 = vmul.f32 %v1283, %v1286
    %v1291 = vmul.f32 %v1284, %v1286
    %v1293 = vperm.slane %v334, 0
    %v1295 = vadd.f32 %v1288, %v1293
    %v1296 = vadd.f32 %v1289, %v1293
    %v1297 = vadd.f32 %v1290, %v1293
    %v1298 = vadd.f32 %v1291, %v1293
  $region94: #{timesformer_forward.1} parent=0 // loop_footer
    %s340 = sadd.s32 1, %s336
  $region95: #{timesformer_forward.1} parent=0 // loop_footer_branch
    %335 = sbr.rel target = $region91
  $region96: #{timesformer_forward.1} parent=0 // loop_exit
    _
  %v1300 = vrot.slane %v344, 7
  %vm1302 = vcmask 1040384
  %v1303 = vsel %vm1302, %v342, %v1300
  %v1304 = vld [vmem:[%s18] sm:$0x1]
  %v1305 = vld [vmem:[%s19] sm:$0x1]
  %vm1306 = vcmask 1041408
  %v1307 = vsel %vm1306, %v1303, 0.0
  %1308 = vadd.xlane.f32.xlu0 %v1307
  %v1309 = vpop.xlane.xlu0 %1308
  %v1310 = vrcp.pop 128.0
  %v1311 = vmul.f32 128.0, %v1310
  %v1312 = vsub.f32 1.0, %v1311
  %v1313 = vmul.f32 %v1310, %v1312
  %v1314 = vadd.f32 %v1310, %v1313
  %vm1315 = vweird.f32 %v1310
  %v1316 = vsel %vm1315, %v1310, %v1314
  %v1317 = vmul.f32 %v1309, %v1316
  %v1318 = vsub.f32 %v1303, %v1317
  %v1319 = vmul.f32 %v1318, %v1318
  %v1320 = vsel %vm1306, %v1319, 0.0
  %1321 = vadd.xlane.f32.xlu0 %v1320
  %v1322 = vpop.xlane.xlu0 %1321
  %v1323 = vmul.f32 %v1322, %v1316
  %v1324 = vadd.f32 %v1323, 1e-05
  %v1325 = vrsqrt.pop %v1324
  %v1326 = vmul.f32 %v1325, %v1324
  %v1327 = vmul.f32 %v1326, %v1325
  %v1328 = vmul.f32 0.5, %v1327
  %v1329 = vsub.f32 1.5, %v1328
  %v1330 = vmul.f32 %v1325, %v1329
  %vm1331 = vweird.f32 %v1324
  %vm1332 = vweird.f32 %v1325
  %vm1333 = vmor %vm1331, %vm1332
  %v1334 = vsel %vm1333, %v1325, %v1330
  %v1335 = vmul.f32 %v1318, %v1334
  %v1337 = vperm.slane %v1304, 0
  %v1339 = vmul.f32 %v1335, %v1337
  %v1341 = vperm.slane %v1305, 0
  %v1343 = vadd.f32 %v1339, %v1341
  %v1344 = vld [vmem:[%s20] sm:$0xf]
  %v1345 = vld [vmem:[%s20 + $0x4] sm:$0xf]
  %v1346 = vld [vmem:[%s20 + $0x8] sm:$0xf]
  %v1347 = vld [vmem:[%s20 + $0xc] sm:$0xf]
  %v1348 = vld [vmem:[%s20 + $0x10] sm:$0xf]
  %v1349 = vld [vmem:[%s20 + $0x14] sm:$0xf]
  %v1350 = vld [vmem:[%s20 + $0x18] sm:$0xf]
  %v1351 = vld [vmem:[%s20 + $0x1c] sm:$0xf]
  %v1352 = vld [vmem:[%s20 + $0x20] sm:$0xf]
  %v1353 = vld [vmem:[%s20 + $0x24] sm:$0xf]
  %v1354 = vld [vmem:[%s20 + $0x28] sm:$0xf]
  %v1355 = vld [vmem:[%s20 + $0x2c] sm:$0xf]
  %v1356 = vld [vmem:[%s20 + $0x30] sm:$0xf]
  %v1357 = vld [vmem:[%s20 + $0x34] sm:$0xf]
  %v1358 = vld [vmem:[%s20 + $0x38] sm:$0xf]
  %v1359 = vld [vmem:[%s20 + $0x3c] sm:$0xf]
  %v1360 = vpack.c.bf16 %v1343, %v1343
  %v1361 = vld [vmem:[%s21] sm:$0x1]
  %v1363 = vperm.slane %v1361, 0
  %v1381 = vunpack.c.l.b16 %v1344
  %v1382 = vunpack.c.l.b16 %v1345
  %v1383 = vunpack.c.l.b16 %v1346
  %v1384 = vunpack.c.l.b16 %v1347
  %v1385 = vunpack.c.l.b16 %v1348
  %v1386 = vunpack.c.l.b16 %v1349
  %v1387 = vunpack.c.l.b16 %v1350
  %v1388 = vunpack.c.l.b16 %v1351
  %v1389 = vunpack.c.l.b16 %v1352
  %v1390 = vunpack.c.l.b16 %v1353
  %v1391 = vunpack.c.l.b16 %v1354
  %v1392 = vunpack.c.l.b16 %v1355
  %v1393 = vunpack.c.l.b16 %v1356
  %v1394 = vunpack.c.l.b16 %v1357
  %v1395 = vunpack.c.l.b16 %v1358
  %v1396 = vunpack.c.l.b16 %v1359
  %v1397 = vpack.c.b16 %v1382, %v1381
  %v1398 = vpack.c.b16 %v1384, %v1383
  %v1399 = vpack.c.b16 %v1386, %v1385
  %v1400 = vpack.c.b16 %v1388, %v1387
  %v1401 = vpack.c.b16 %v1390, %v1389
  %v1402 = vpack.c.b16 %v1392, %v1391
  %v1403 = vpack.c.b16 %v1394, %v1393
  %v1404 = vpack.c.b16 %v1396, %v1395
  %1413 = vmatpush.bf16.msra.mxu0 %v1404
  %1414 = vmatpush.bf16.msra.mxu0 %v1403
  %1415 = vmatpush.bf16.msra.mxu0 %v1402
  %1416 = vmatpush.bf16.msra.mxu0 %v1401
  %1417 = vmatpush.bf16.msra.mxu0 %v1400
  %1418 = vmatpush.bf16.msra.mxu0 %v1399
  %1419 = vmatpush.bf16.msra.mxu0 %v1398
  %1420 = vmatpush.bf16.msra.mxu0 %v1397
  %1421 = vmatmul.bf16.gmra.mxu0 %v1360
  %v1422 = vpop.f32.mrf.mxu0
  %v1423 = vadd.f32 %v1363, %v1422
  %v1424 = vpop.f32.mrf.mxu0
  %1425 = vdwg.mxu0
  %vm1426 = vcmask 9216
  %1427 = vst.msk [vmem:[%s22] sm:$0x3] %vm1426, %v1423
  // Predicated region
  $region97: #{timesformer_forward.1} parent=0 // pred_check
    _
  $region98: #{timesformer_forward.1} parent=0 // pred_check_branch
    %1429 = sbr.rel (0) target = $region100
  $region99: #{timesformer_forward.1} parent=0 // pred_region
    _
  $region100: #{timesformer_forward.1} parent=0 // pred_fallthru
    _
  // Predicated region
  $region101: #{timesformer_forward.1} parent=0 // pred_check
    _
  $region102: #{timesformer_forward.1} parent=0 // pred_check_branch
    %1431 = sbr.rel (0) target = $region104
  $region103: #{timesformer_forward.1} parent=0 // pred_region
    _
  $region104: #{timesformer_forward.1} parent=0 // pred_fallthru
    _

</llo_original>
